<compile_context>
chip_gen: v6e
topology: v6e:2x2x1
jax: 0.10.0
libtpu: 0.0.40
codegen_flags: <defaults>
</compile_context>

<pallas_src>
import functools

import jax
import jax.numpy as jnp
from jax.experimental import pallas as pl
from jax.experimental.pallas import tpu as pltpu

# Encoder: 784 -> 128 -> 64 -> 12 -> 3   (Tanh after first 3, none at bottleneck)
# Decoder:   3 ->  12 -> 64 -> 128 -> 784 (Tanh after first 3, Sigmoid at end)
ENC_DIMS = [(28 * 28, 128), (128, 64), (64, 12), (12, 3)]
DEC_DIMS = [(3, 12), (12, 64), (64, 128), (128, 28 * 28)]

LANE = 128          # merged head block is one full lane group
ENC_OFF = 16        # encode columns live in lanes 16..18 of the merged block
MAX_TILE_B = 512    # batch-tile cap (multiple of 16 for bf16 sublane packing)
MIN_SPLIT_TILE = 256  # only split into 2 tiles if each tile keeps >= 256 rows


def autoencoder_kernel(x_ref,
                       ew0, eb0, ew1, eb1, ew2, eb2,
                       wm, bm, dw1, db1, dw2, db2, dw3, db3,
                       enc_ref, dec_ref):
    """One (TILE_B, 784) batch tile; weights stay VMEM-resident across tiles."""
    f32 = jnp.float32
    bf16 = jnp.bfloat16

    def linear(h, w_ref, b_ref):
        # bf16 MXU inputs, f32 accumulation, f32 bias add.
        return jnp.dot(h.astype(bf16), w_ref[...],
                       preferred_element_type=f32) + b_ref[...]

    h = x_ref[...]                                     # (TILE_B, 784) bf16

    # ---- encoder ----
    h1 = jnp.tanh(linear(h, ew0, eb0))                 # (TILE_B, 128) f32
    h2 = jnp.tanh(linear(h1, ew1, eb1))                # (TILE_B, 64)
    h3 = jnp.tanh(linear(h2, ew2, eb2))                # (TILE_B, 12)

    # ---- merged head: one (12,128) matmul gives both
    #   lanes 0..11  : fused bottleneck+decoder-0 pre-activation (h3 @ (ew3@dw0))
    #   lanes 16..18 : encode head (h3 @ ew3 + eb3)
    z = linear(h3, wm, bm)                             # (TILE_B, 128) f32
    enc_ref[...] = z.astype(enc_ref.dtype)             # dense bf16 128-lane store

    # ---- decoder ----
    g1 = jnp.tanh(z[:, :12])                           # (TILE_B, 12), lane-0 aligned
    g2 = jnp.tanh(linear(g1, dw1, db1))                # (TILE_B, 64)
    g3 = jnp.tanh(linear(g2, dw2, db2))                # (TILE_B, 128)
    zz = linear(g3, dw3, db3)                          # (TILE_B, 784)
    # sigmoid(z) == 0.5 * tanh(0.5*z) + 0.5  (exact; single EUP op)
    dec_ref[...] = (0.5 * jnp.tanh(0.5 * zz) + 0.5).astype(dec_ref.dtype)


def prepare_params(params):
    """f32 [w, b]*8 (encoder then decoder) -> kernel operand list."""
    (ew0, eb0, ew1, eb1, ew2, eb2, ew3, eb3,
     dw0, db0, dw1, db1, dw2, db2, dw3, db3) = params

    # Fold encoder bottleneck + decoder layer 0 (no activation at the bottleneck):
    #   (h3 @ ew3 + eb3) @ dw0 + db0 == h3 @ (ew3 @ dw0) + (eb3 @ dw0 + db0)
    w_fused = ew3 @ dw0                      # (12, 12)
    b_fused = eb3 @ dw0 + db0                # (1, 12)

    # Merge the encode head into the same 128-lane matmul:
    #   lanes 0..11 -> fused decoder-0 weights, lanes 16..18 -> encode head.
    w_m = jnp.zeros((12, LANE), jnp.float32)
    w_m = w_m.at[:, :12].set(w_fused).at[:, ENC_OFF:ENC_OFF + 3].set(ew3)
    b_m = jnp.zeros((1, LANE), jnp.float32)
    b_m = b_m.at[:, :12].set(b_fused).at[:, ENC_OFF:ENC_OFF + 3].set(eb3)

    weights = [ew0, ew1, ew2, w_m, dw1, dw2, dw3]
    biases = [eb0, eb1, eb2, b_m, db1, db2, db3]

    prepped = []
    for w, b in zip(weights, biases):
        prepped += [w.astype(jnp.bfloat16), b.astype(jnp.float32)]
    return prepped


def _round_up(n, m):
    return -(-n // m) * m


def _choose_tile_b(batch, max_tile=MAX_TILE_B):
    """Batch tile: multiple of 16, <= max_tile, batch-aware for small inputs,
    and an even tile count for large batches (v7x: 2 TensorCores share the
    parallel grid axis, so an odd/single tile count leaves one TC idle)."""
    b16 = _round_up(batch, 16)
    if b16 <= max_tile:
        if b16 >= 2 * MIN_SPLIT_TILE:
            return _round_up(-(-b16 // 2), 16)     # 2 balanced tiles for v7x
        return b16                                 # single small tile, no waste
    n_tiles = -(-b16 // max_tile)
    if n_tiles % 2:
        n_tiles += 1                               # keep the tile count even
    return _round_up(-(-b16 // n_tiles), 16)


@functools.partial(jax.jit, static_argnames=("tile_b",))
def _autoencoder_forward(x, prepped_params, tile_b):
    batch = x.shape[0]
    n_tiles = pl.cdiv(batch, tile_b)
    b_pad = n_tiles * tile_b

    xb = x.astype(jnp.bfloat16)
    if b_pad != batch:
        xb = jnp.pad(xb, ((0, b_pad - batch), (0, 0)))

    # Full-array blocks with a constant index map: DMA'd once, VMEM-resident
    # for every batch tile. (They are still double-buffered by default, but at
    # ~1 MiB total that is immaterial next to the x/decode tile buffers.)
    resident = [pl.BlockSpec(p.shape, lambda i: (0, 0)) for p in prepped_params]

    out_shapes = (
        jax.ShapeDtypeStruct((b_pad, LANE), jnp.bfloat16),      # merged head block
        jax.ShapeDtypeStruct((b_pad, 28 * 28), jnp.bfloat16),   # decode
    )

    enc_padded, decode = pl.pallas_call(
        autoencoder_kernel,
        out_shape=out_shapes,
        grid=(n_tiles,),
        in_specs=[pl.BlockSpec((tile_b, 28 * 28), lambda i: (i, 0))] + resident,
        out_specs=(
            pl.BlockSpec((tile_b, LANE), lambda i: (i, 0)),
            pl.BlockSpec((tile_b, 28 * 28), lambda i: (i, 0)),
        ),
        compiler_params=pltpu.CompilerParams(
            dimension_semantics=("parallel",)),   # v7x: shard tiles over 2 TCs
    )(xb, *prepped_params)

    encode = enc_padded[:batch, ENC_OFF:ENC_OFF + 3].astype(jnp.float32)
    return encode, decode[:batch]


def autoencoder_forward(x, prepped_params):
    """x: (B, 784). Returns (encode (B, 3) f32, decode (B, 784) bf16)."""
    tile_b = _choose_tile_b(x.shape[0])
    return _autoencoder_forward(x, prepped_params, tile_b=tile_b)


def init_params(key):
    """Deterministic PyTorch-style init: U(-1/sqrt(fan_in), 1/sqrt(fan_in))."""
    params = []
    for (fan_in, fan_out) in ENC_DIMS + DEC_DIMS:
        key, kw, kb = jax.random.split(key, 3)
        bound = 1.0 / jnp.sqrt(jnp.float32(fan_in))
        w = jax.random.uniform(kw, (fan_in, fan_out), jnp.float32, -bound, bound)
        b = jax.random.uniform(kb, (1, fan_out), jnp.float32, -bound, bound)
        params += [w, b]
    return params


def reference_forward(x, params):
    """Pure-JAX f32 reference for correctness checking."""
    h = x
    for i in range(4):                       # encoder
        w, b = params[2 * i], params[2 * i + 1]
        h = h @ w + b
        if i < 3:
            h = jnp.tanh(h)
    encode = h
    for i in range(4):                       # decoder
        w, b = params[8 + 2 * i], params[8 + 2 * i + 1]
        h = h @ w + b
        h = jnp.tanh(h) if i < 3 else jax.nn.sigmoid(h)
    return encode, h


if __name__ == "__main__":
    key = jax.random.PRNGKey(0)
    kp, kx = jax.random.split(key)

    params = init_params(kp)
    prepped = prepare_params(params)

    batch = 8
    x = jax.random.uniform(kx, (batch, 28 * 28), jnp.float32)  # MNIST-like input

    encode, decode = autoencoder_forward(x, prepped)
    jax.block_until_ready((encode, decode))

    # sanity check vs pure-JAX f32 reference (bf16 matmul path -> loose tol)
    enc_ref, dec_ref = reference_forward(x, params)
    assert encode.shape == (batch, 3) and decode.shape == (batch, 28 * 28)
    assert jnp.allclose(encode, enc_ref, atol=5e-2, rtol=5e-2)
    assert jnp.allclose(decode.astype(jnp.float32), dec_ref, atol=5e-2, rtol=5e-2)

    print("KERNEL_OK")
</pallas_src>

<mosaic_0001>
module attributes {stable_mosaic.version = 11 : i64} {
  func.func @autoencoder_kernel(%arg0: i32, %arg1: memref<16x784xbf16, #tpu.memory_space<vmem>>, %arg2: memref<784x128xbf16, #tpu.memory_space<vmem>>, %arg3: memref<1x128xf32, #tpu.memory_space<vmem>>, %arg4: memref<128x64xbf16, #tpu.memory_space<vmem>>, %arg5: memref<1x64xf32, #tpu.memory_space<vmem>>, %arg6: memref<64x12xbf16, #tpu.memory_space<vmem>>, %arg7: memref<1x12xf32, #tpu.memory_space<vmem>>, %arg8: memref<12x128xbf16, #tpu.memory_space<vmem>>, %arg9: memref<1x128xf32, #tpu.memory_space<vmem>>, %arg10: memref<12x64xbf16, #tpu.memory_space<vmem>>, %arg11: memref<1x64xf32, #tpu.memory_space<vmem>>, %arg12: memref<64x128xbf16, #tpu.memory_space<vmem>>, %arg13: memref<1x128xf32, #tpu.memory_space<vmem>>, %arg14: memref<128x784xbf16, #tpu.memory_space<vmem>>, %arg15: memref<1x784xf32, #tpu.memory_space<vmem>>, %arg16: memref<16x128xbf16, #tpu.memory_space<vmem>>, %arg17: memref<16x784xbf16, #tpu.memory_space<vmem>>) attributes {dimension_semantics = [#tpu.dimension_semantics<parallel>], iteration_bounds = array<i64: 1>, scalar_prefetch = 0 : i64, scratch_operands = 0 : i64, tpu.core_type = #tpu.core_type<tc>, window_params = [{transform_indices = @transform_0, window_bounds = array<i64: 16, 784>}, {pipeline_mode = #tpu.pipeline_mode<synchronous>, transform_indices = @transform_1, window_bounds = array<i64: 784, 128>}, {pipeline_mode = #tpu.pipeline_mode<synchronous>, transform_indices = @transform_2, window_bounds = array<i64: 1, 128>}, {pipeline_mode = #tpu.pipeline_mode<synchronous>, transform_indices = @transform_3, window_bounds = array<i64: 128, 64>}, {pipeline_mode = #tpu.pipeline_mode<synchronous>, transform_indices = @transform_4, window_bounds = array<i64: 1, 64>}, {pipeline_mode = #tpu.pipeline_mode<synchronous>, transform_indices = @transform_5, window_bounds = array<i64: 64, 12>}, {pipeline_mode = #tpu.pipeline_mode<synchronous>, transform_indices = @transform_6, window_bounds = array<i64: 1, 12>}, {pipeline_mode = #tpu.pipeline_mode<synchronous>, transform_indices = @transform_7, window_bounds = array<i64: 12, 128>}, {pipeline_mode = #tpu.pipeline_mode<synchronous>, transform_indices = @transform_8, window_bounds = array<i64: 1, 128>}, {pipeline_mode = #tpu.pipeline_mode<synchronous>, transform_indices = @transform_9, window_bounds = array<i64: 12, 64>}, {pipeline_mode = #tpu.pipeline_mode<synchronous>, transform_indices = @transform_10, window_bounds = array<i64: 1, 64>}, {pipeline_mode = #tpu.pipeline_mode<synchronous>, transform_indices = @transform_11, window_bounds = array<i64: 64, 128>}, {pipeline_mode = #tpu.pipeline_mode<synchronous>, transform_indices = @transform_12, window_bounds = array<i64: 1, 128>}, {pipeline_mode = #tpu.pipeline_mode<synchronous>, transform_indices = @transform_13, window_bounds = array<i64: 128, 784>}, {pipeline_mode = #tpu.pipeline_mode<synchronous>, transform_indices = @transform_14, window_bounds = array<i64: 1, 784>}, {transform_indices = @transform_15, window_bounds = array<i64: 16, 128>}, {transform_indices = @transform_16, window_bounds = array<i64: 16, 784>}]} {
    %c0 = arith.constant 0 : index
    %c0_0 = arith.constant 0 : index
    %0 = vector.load %arg1[%c0, %c0_0] : memref<16x784xbf16, #tpu.memory_space<vmem>>, vector<16x784xbf16>
    %c0_1 = arith.constant 0 : index
    %c0_2 = arith.constant 0 : index
    %1 = vector.load %arg2[%c0_1, %c0_2] : memref<784x128xbf16, #tpu.memory_space<vmem>>, vector<784x128xbf16>
    %cst = arith.constant dense<0.000000e+00> : vector<16x128xf32>
    %2 = tpu.matmul %0, %1, %cst {dimension_numbers = #tpu.dot_dimension_numbers<[1], [0], [0], [1], [0, 0, 1, 1], [], []>} : vector<16x784xbf16>, vector<784x128xbf16>, vector<16x128xf32> -> vector<16x128xf32>
    %c0_3 = arith.constant 0 : index
    %c0_4 = arith.constant 0 : index
    %3 = vector.load %arg3[%c0_3, %c0_4] : memref<1x128xf32, #tpu.memory_space<vmem>>, vector<1x128xf32>
    %4 = vector.broadcast %3 : vector<1x128xf32> to vector<16x128xf32>
    %5 = arith.addf %2, %4 : vector<16x128xf32>
    %6 = math.tanh %5 : vector<16x128xf32>
    %7 = arith.truncf %6 : vector<16x128xf32> to vector<16x128xbf16>
    %c0_5 = arith.constant 0 : index
    %c0_6 = arith.constant 0 : index
    %8 = vector.load %arg4[%c0_5, %c0_6] : memref<128x64xbf16, #tpu.memory_space<vmem>>, vector<128x64xbf16>
    %cst_7 = arith.constant dense<0.000000e+00> : vector<16x64xf32>
    %9 = tpu.matmul %7, %8, %cst_7 {dimension_numbers = #tpu.dot_dimension_numbers<[1], [0], [0], [1], [0, 0, 1, 1], [], []>} : vector<16x128xbf16>, vector<128x64xbf16>, vector<16x64xf32> -> vector<16x64xf32>
    %c0_8 = arith.constant 0 : index
    %c0_9 = arith.constant 0 : index
    %10 = vector.load %arg5[%c0_8, %c0_9] : memref<1x64xf32, #tpu.memory_space<vmem>>, vector<1x64xf32>
    %11 = vector.broadcast %10 : vector<1x64xf32> to vector<16x64xf32>
    %12 = arith.addf %9, %11 : vector<16x64xf32>
    %13 = math.tanh %12 : vector<16x64xf32>
    %14 = arith.truncf %13 : vector<16x64xf32> to vector<16x64xbf16>
    %c0_10 = arith.constant 0 : index
    %c0_11 = arith.constant 0 : index
    %15 = vector.load %arg6[%c0_10, %c0_11] : memref<64x12xbf16, #tpu.memory_space<vmem>>, vector<64x12xbf16>
    %cst_12 = arith.constant dense<0.000000e+00> : vector<16x12xf32>
    %16 = tpu.matmul %14, %15, %cst_12 {dimension_numbers = #tpu.dot_dimension_numbers<[1], [0], [0], [1], [0, 0, 1, 1], [], []>} : vector<16x64xbf16>, vector<64x12xbf16>, vector<16x12xf32> -> vector<16x12xf32>
    %c0_13 = arith.constant 0 : index
    %c0_14 = arith.constant 0 : index
    %17 = vector.load %arg7[%c0_13, %c0_14] : memref<1x12xf32, #tpu.memory_space<vmem>>, vector<1x12xf32>
    %18 = vector.broadcast %17 : vector<1x12xf32> to vector<16x12xf32>
    %19 = arith.addf %16, %18 : vector<16x12xf32>
    %20 = math.tanh %19 : vector<16x12xf32>
    %21 = arith.truncf %20 : vector<16x12xf32> to vector<16x12xbf16>
    %c0_15 = arith.constant 0 : index
    %c0_16 = arith.constant 0 : index
    %22 = vector.load %arg8[%c0_15, %c0_16] : memref<12x128xbf16, #tpu.memory_space<vmem>>, vector<12x128xbf16>
    %cst_17 = arith.constant dense<0.000000e+00> : vector<16x128xf32>
    %23 = tpu.matmul %21, %22, %cst_17 {dimension_numbers = #tpu.dot_dimension_numbers<[1], [0], [0], [1], [0, 0, 1, 1], [], []>} : vector<16x12xbf16>, vector<12x128xbf16>, vector<16x128xf32> -> vector<16x128xf32>
    %c0_18 = arith.constant 0 : index
    %c0_19 = arith.constant 0 : index
    %24 = vector.load %arg9[%c0_18, %c0_19] : memref<1x128xf32, #tpu.memory_space<vmem>>, vector<1x128xf32>
    %25 = vector.broadcast %24 : vector<1x128xf32> to vector<16x128xf32>
    %26 = arith.addf %23, %25 : vector<16x128xf32>
    %27 = arith.truncf %26 : vector<16x128xf32> to vector<16x128xbf16>
    %c0_20 = arith.constant 0 : index
    %c0_21 = arith.constant 0 : index
    %28 = vector.load %arg16[%c0_20, %c0_21] : memref<16x128xbf16, #tpu.memory_space<vmem>>, vector<16x128xbf16>
    tpu.vector_store %arg16[%c0_20, %c0_21], %27 {strides = array<i32>} : memref<16x128xbf16, #tpu.memory_space<vmem>>, vector<16x128xbf16>,
    %29 = vector.extract_strided_slice %26 {offsets = [0, 0], sizes = [16, 12], strides = [1, 1]} : vector<16x128xf32> to vector<16x12xf32>
    %30 = math.tanh %29 : vector<16x12xf32>
    %31 = arith.truncf %30 : vector<16x12xf32> to vector<16x12xbf16>
    %c0_22 = arith.constant 0 : index
    %c0_23 = arith.constant 0 : index
    %32 = vector.load %arg10[%c0_22, %c0_23] : memref<12x64xbf16, #tpu.memory_space<vmem>>, vector<12x64xbf16>
    %cst_24 = arith.constant dense<0.000000e+00> : vector<16x64xf32>
    %33 = tpu.matmul %31, %32, %cst_24 {dimension_numbers = #tpu.dot_dimension_numbers<[1], [0], [0], [1], [0, 0, 1, 1], [], []>} : vector<16x12xbf16>, vector<12x64xbf16>, vector<16x64xf32> -> vector<16x64xf32>
    %c0_25 = arith.constant 0 : index
    %c0_26 = arith.constant 0 : index
    %34 = vector.load %arg11[%c0_25, %c0_26] : memref<1x64xf32, #tpu.memory_space<vmem>>, vector<1x64xf32>
    %35 = vector.broadcast %34 : vector<1x64xf32> to vector<16x64xf32>
    %36 = arith.addf %33, %35 : vector<16x64xf32>
    %37 = math.tanh %36 : vector<16x64xf32>
    %38 = arith.truncf %37 : vector<16x64xf32> to vector<16x64xbf16>
    %c0_27 = arith.constant 0 : index
    %c0_28 = arith.constant 0 : index
    %39 = vector.load %arg12[%c0_27, %c0_28] : memref<64x128xbf16, #tpu.memory_space<vmem>>, vector<64x128xbf16>
    %cst_29 = arith.constant dense<0.000000e+00> : vector<16x128xf32>
    %40 = tpu.matmul %38, %39, %cst_29 {dimension_numbers = #tpu.dot_dimension_numbers<[1], [0], [0], [1], [0, 0, 1, 1], [], []>} : vector<16x64xbf16>, vector<64x128xbf16>, vector<16x128xf32> -> vector<16x128xf32>
    %c0_30 = arith.constant 0 : index
    %c0_31 = arith.constant 0 : index
    %41 = vector.load %arg13[%c0_30, %c0_31] : memref<1x128xf32, #tpu.memory_space<vmem>>, vector<1x128xf32>
    %42 = vector.broadcast %41 : vector<1x128xf32> to vector<16x128xf32>
    %43 = arith.addf %40, %42 : vector<16x128xf32>
    %44 = math.tanh %43 : vector<16x128xf32>
    %45 = arith.truncf %44 : vector<16x128xf32> to vector<16x128xbf16>
    %c0_32 = arith.constant 0 : index
    %c0_33 = arith.constant 0 : index
    %46 = vector.load %arg14[%c0_32, %c0_33] : memref<128x784xbf16, #tpu.memory_space<vmem>>, vector<128x784xbf16>
    %cst_34 = arith.constant dense<0.000000e+00> : vector<16x784xf32>
    %47 = tpu.matmul %45, %46, %cst_34 {dimension_numbers = #tpu.dot_dimension_numbers<[1], [0], [0], [1], [0, 0, 1, 1], [], []>} : vector<16x128xbf16>, vector<128x784xbf16>, vector<16x784xf32> -> vector<16x784xf32>
    %c0_35 = arith.constant 0 : index
    %c0_36 = arith.constant 0 : index
    %48 = vector.load %arg15[%c0_35, %c0_36] : memref<1x784xf32, #tpu.memory_space<vmem>>, vector<1x784xf32>
    %49 = vector.broadcast %48 : vector<1x784xf32> to vector<16x784xf32>
    %50 = arith.addf %47, %49 : vector<16x784xf32>
    %cst_37 = arith.constant 5.000000e-01 : f32
    %51 = vector.broadcast %cst_37 : f32 to vector<16x784xf32>
    %52 = arith.mulf %51, %50 : vector<16x784xf32>
    %53 = math.tanh %52 : vector<16x784xf32>
    %cst_38 = arith.constant 5.000000e-01 : f32
    %54 = vector.broadcast %cst_38 : f32 to vector<16x784xf32>
    %55 = arith.mulf %54, %53 : vector<16x784xf32>
    %cst_39 = arith.constant 5.000000e-01 : f32
    %56 = vector.broadcast %cst_39 : f32 to vector<16x784xf32>
    %57 = arith.addf %55, %56 : vector<16x784xf32>
    %58 = arith.truncf %57 : vector<16x784xf32> to vector<16x784xbf16>
    %c0_40 = arith.constant 0 : index
    %c0_41 = arith.constant 0 : index
    %59 = vector.load %arg17[%c0_40, %c0_41] : memref<16x784xbf16, #tpu.memory_space<vmem>>, vector<16x784xbf16>
    tpu.vector_store %arg17[%c0_40, %c0_41], %58 {strides = array<i32>} : memref<16x784xbf16, #tpu.memory_space<vmem>>, vector<16x784xbf16>,
    return
  }
  func.func @transform_0(%arg0: i32) -> (i32, i32) {
    %c0_i32 = arith.constant 0 : i32
    %c0_i32_0 = arith.constant 0 : i32
    return %arg0, %c0_i32 : i32, i32
  }
  func.func @transform_1(%arg0: i32) -> (i32, i32) {
    %c0_i32 = arith.constant 0 : i32
    %c0_i32_0 = arith.constant 0 : i32
    %c0_i32_1 = arith.constant 0 : i32
    return %c0_i32, %c0_i32_0 : i32, i32
  }
  func.func @transform_2(%arg0: i32) -> (i32, i32) {
    %c0_i32 = arith.constant 0 : i32
    %c0_i32_0 = arith.constant 0 : i32
    %c0_i32_1 = arith.constant 0 : i32
    return %c0_i32, %c0_i32_0 : i32, i32
  }
  func.func @transform_3(%arg0: i32) -> (i32, i32) {
    %c0_i32 = arith.constant 0 : i32
    %c0_i32_0 = arith.constant 0 : i32
    %c0_i32_1 = arith.constant 0 : i32
    return %c0_i32, %c0_i32_0 : i32, i32
  }
  func.func @transform_4(%arg0: i32) -> (i32, i32) {
    %c0_i32 = arith.constant 0 : i32
    %c0_i32_0 = arith.constant 0 : i32
    %c0_i32_1 = arith.constant 0 : i32
    return %c0_i32, %c0_i32_0 : i32, i32
  }
  func.func @transform_5(%arg0: i32) -> (i32, i32) {
    %c0_i32 = arith.constant 0 : i32
    %c0_i32_0 = arith.constant 0 : i32
    %c0_i32_1 = arith.constant 0 : i32
    return %c0_i32, %c0_i32_0 : i32, i32
  }
  func.func @transform_6(%arg0: i32) -> (i32, i32) {
    %c0_i32 = arith.constant 0 : i32
    %c0_i32_0 = arith.constant 0 : i32
    %c0_i32_1 = arith.constant 0 : i32
    return %c0_i32, %c0_i32_0 : i32, i32
  }
  func.func @transform_7(%arg0: i32) -> (i32, i32) {
    %c0_i32 = arith.constant 0 : i32
    %c0_i32_0 = arith.constant 0 : i32
    %c0_i32_1 = arith.constant 0 : i32
    return %c0_i32, %c0_i32_0 : i32, i32
  }
  func.func @transform_8(%arg0: i32) -> (i32, i32) {
    %c0_i32 = arith.constant 0 : i32
    %c0_i32_0 = arith.constant 0 : i32
    %c0_i32_1 = arith.constant 0 : i32
    return %c0_i32, %c0_i32_0 : i32, i32
  }
  func.func @transform_9(%arg0: i32) -> (i32, i32) {
    %c0_i32 = arith.constant 0 : i32
    %c0_i32_0 = arith.constant 0 : i32
    %c0_i32_1 = arith.constant 0 : i32
    return %c0_i32, %c0_i32_0 : i32, i32
  }
  func.func @transform_10(%arg0: i32) -> (i32, i32) {
    %c0_i32 = arith.constant 0 : i32
    %c0_i32_0 = arith.constant 0 : i32
    %c0_i32_1 = arith.constant 0 : i32
    return %c0_i32, %c0_i32_0 : i32, i32
  }
  func.func @transform_11(%arg0: i32) -> (i32, i32) {
    %c0_i32 = arith.constant 0 : i32
    %c0_i32_0 = arith.constant 0 : i32
    %c0_i32_1 = arith.constant 0 : i32
    return %c0_i32, %c0_i32_0 : i32, i32
  }
  func.func @transform_12(%arg0: i32) -> (i32, i32) {
    %c0_i32 = arith.constant 0 : i32
    %c0_i32_0 = arith.constant 0 : i32
    %c0_i32_1 = arith.constant 0 : i32
    return %c0_i32, %c0_i32_0 : i32, i32
  }
  func.func @transform_13(%arg0: i32) -> (i32, i32) {
    %c0_i32 = arith.constant 0 : i32
    %c0_i32_0 = arith.constant 0 : i32
    %c0_i32_1 = arith.constant 0 : i32
    return %c0_i32, %c0_i32_0 : i32, i32
  }
  func.func @transform_14(%arg0: i32) -> (i32, i32) {
    %c0_i32 = arith.constant 0 : i32
    %c0_i32_0 = arith.constant 0 : i32
    %c0_i32_1 = arith.constant 0 : i32
    return %c0_i32, %c0_i32_0 : i32, i32
  }
  func.func @transform_15(%arg0: i32) -> (i32, i32) {
    %c0_i32 = arith.constant 0 : i32
    %c0_i32_0 = arith.constant 0 : i32
    return %arg0, %c0_i32 : i32, i32
  }
  func.func @transform_16(%arg0: i32) -> (i32, i32) {
    %c0_i32 = arith.constant 0 : i32
    %c0_i32_0 = arith.constant 0 : i32
    return %arg0, %c0_i32 : i32, i32
  }
}

</mosaic_0001>

<llo_original>
// kernel: _autoencoder_forward.1
$region0: #{_autoencoder_forward.1}
  #allocation0 [shape = 'u32[]', space=smem, size = 0x4, offset = 0x4, fixed_abs, tag = 'smem constant byte address 0x4 - core index']
  #allocation1 [shape = 'u32[144,128]{1,0:T(1,128)}', space=vmem, size = 0x12000, scoped, tag = 'internal scratch']
  %s0 = inlined_call_operand.vmem [shape: bf16[16,784], index: 0, kind: input, shape index: {}]
  %s1 = inlined_call_operand.vmem [shape: bf16[784,128], index: 1, kind: input, shape index: {}]
  %s2 = inlined_call_operand.vmem [shape: f32[1,128], index: 2, kind: input, shape index: {}]
  %s3 = inlined_call_operand.vmem [shape: bf16[128,64], index: 3, kind: input, shape index: {}]
  %s4 = inlined_call_operand.vmem [shape: f32[1,64], index: 4, kind: input, shape index: {}]
  %s5 = inlined_call_operand.vmem [shape: bf16[64,12], index: 5, kind: input, shape index: {}]
  %s6 = inlined_call_operand.vmem [shape: f32[1,12], index: 6, kind: input, shape index: {}]
  %s7 = inlined_call_operand.vmem [shape: bf16[12,128], index: 7, kind: input, shape index: {}]
  %s8 = inlined_call_operand.vmem [shape: f32[1,128], index: 8, kind: input, shape index: {}]
  %s9 = inlined_call_operand.vmem [shape: bf16[12,64], index: 9, kind: input, shape index: {}]
  %s10 = inlined_call_operand.vmem [shape: f32[1,64], index: 10, kind: input, shape index: {}]
  %s11 = inlined_call_operand.vmem [shape: bf16[64,128], index: 11, kind: input, shape index: {}]
  %s12 = inlined_call_operand.vmem [shape: f32[1,128], index: 12, kind: input, shape index: {}]
  %s13 = inlined_call_operand.vmem [shape: bf16[128,784], index: 13, kind: input, shape index: {}]
  %s14 = inlined_call_operand.vmem [shape: f32[1,784], index: 14, kind: input, shape index: {}]
  %s15 = inlined_call_operand.vmem [shape: bf16[16,128], index: 15, kind: output, shape index: {0}]
  %s16 = inlined_call_operand.vmem [shape: bf16[16,784], index: 16, kind: output, shape index: {1}]
  %17 = xla_tuple %s15, %s16
  %s18 = sld [smem:[#allocation0]]
  $region78: #{_autoencoder_forward.1} parent=0
    _
  %s20 = ssub.s32 1, %s18
  %s21 = scalar_select 0, %s20, %s18
  // Predicated region
  $region2: #{_autoencoder_forward.1} parent=0 // pred_check
    _
  $region3: #{_autoencoder_forward.1} parent=0 // pred_check_branch
    %23 = sbr.rel (0) target = $region5
  $region4: #{_autoencoder_forward.1} parent=0 // pred_region
    _
  $region5: #{_autoencoder_forward.1} parent=0 // pred_fallthru
    _
  // Predicated region
  $region6: #{_autoencoder_forward.1} parent=0 // pred_check
    _
  $region7: #{_autoencoder_forward.1} parent=0 // pred_check_branch
    %25 = sbr.rel (0) target = $region9
  $region8: #{_autoencoder_forward.1} parent=0 // pred_region
    _
  $region9: #{_autoencoder_forward.1} parent=0 // pred_fallthru
    _
  // Predicated region
  $region10: #{_autoencoder_forward.1} parent=0 // pred_check
    _
  $region11: #{_autoencoder_forward.1} parent=0 // pred_check_branch
    %27 = sbr.rel (0) target = $region13
  $region12: #{_autoencoder_forward.1} parent=0 // pred_region
    _
  $region13: #{_autoencoder_forward.1} parent=0 // pred_fallthru
    _
  // Predicated region
  $region14: #{_autoencoder_forward.1} parent=0 // pred_check
    _
  $region15: #{_autoencoder_forward.1} parent=0 // pred_check_branch
    %29 = sbr.rel (0) target = $region17
  $region16: #{_autoencoder_forward.1} parent=0 // pred_region
    _
  $region17: #{_autoencoder_forward.1} parent=0 // pred_fallthru
    _
  // Predicated region
  $region18: #{_autoencoder_forward.1} parent=0 // pred_check
    _
  $region19: #{_autoencoder_forward.1} parent=0 // pred_check_branch
    %31 = sbr.rel (0) target = $region21
  $region20: #{_autoencoder_forward.1} parent=0 // pred_region
    _
  $region21: #{_autoencoder_forward.1} parent=0 // pred_fallthru
    _
  // Predicated region
  $region22: #{_autoencoder_forward.1} parent=0 // pred_check
    _
  $region23: #{_autoencoder_forward.1} parent=0 // pred_check_branch
    %33 = sbr.rel (0) target = $region25
  $region24: #{_autoencoder_forward.1} parent=0 // pred_region
    _
  $region25: #{_autoencoder_forward.1} parent=0 // pred_fallthru
    _
  // Predicated region
  $region26: #{_autoencoder_forward.1} parent=0 // pred_check
    _
  $region27: #{_autoencoder_forward.1} parent=0 // pred_check_branch
    %35 = sbr.rel (0) target = $region29
  $region28: #{_autoencoder_forward.1} parent=0 // pred_region
    _
  $region29: #{_autoencoder_forward.1} parent=0 // pred_fallthru
    _
  // Predicated region
  $region30: #{_autoencoder_forward.1} parent=0 // pred_check
    _
  $region31: #{_autoencoder_forward.1} parent=0 // pred_check_branch
    %37 = sbr.rel (0) target = $region33
  $region32: #{_autoencoder_forward.1} parent=0 // pred_region
    _
  $region33: #{_autoencoder_forward.1} parent=0 // pred_fallthru
    _
  // Predicated region
  $region34: #{_autoencoder_forward.1} parent=0 // pred_check
    _
  $region35: #{_autoencoder_forward.1} parent=0 // pred_check_branch
    %39 = sbr.rel (0) target = $region37
  $region36: #{_autoencoder_forward.1} parent=0 // pred_region
    _
  $region37: #{_autoencoder_forward.1} parent=0 // pred_fallthru
    _
  // Predicated region
  $region38: #{_autoencoder_forward.1} parent=0 // pred_check
    _
  $region39: #{_autoencoder_forward.1} parent=0 // pred_check_branch
    %41 = sbr.rel (0) target = $region41
  $region40: #{_autoencoder_forward.1} parent=0 // pred_region
    _
  $region41: #{_autoencoder_forward.1} parent=0 // pred_fallthru
    _
  // Predicated region
  $region42: #{_autoencoder_forward.1} parent=0 // pred_check
    _
  $region43: #{_autoencoder_forward.1} parent=0 // pred_check_branch
    %43 = sbr.rel (0) target = $region45
  $region44: #{_autoencoder_forward.1} parent=0 // pred_region
    _
  $region45: #{_autoencoder_forward.1} parent=0 // pred_fallthru
    _
  // Predicated region
  $region46: #{_autoencoder_forward.1} parent=0 // pred_check
    _
  $region47: #{_autoencoder_forward.1} parent=0 // pred_check_branch
    %45 = sbr.rel (0) target = $region49
  $region48: #{_autoencoder_forward.1} parent=0 // pred_region
    _
  $region49: #{_autoencoder_forward.1} parent=0 // pred_fallthru
    _
  // Predicated region
  $region50: #{_autoencoder_forward.1} parent=0 // pred_check
    _
  $region51: #{_autoencoder_forward.1} parent=0 // pred_check_branch
    %47 = sbr.rel (0) target = $region53
  $region52: #{_autoencoder_forward.1} parent=0 // pred_region
    _
  $region53: #{_autoencoder_forward.1} parent=0 // pred_fallthru
    _
  // Predicated region
  $region54: #{_autoencoder_forward.1} parent=0 // pred_check
    _
  $region55: #{_autoencoder_forward.1} parent=0 // pred_check_branch
    %49 = sbr.rel (0) target = $region57
  $region56: #{_autoencoder_forward.1} parent=0 // pred_region
    _
  $region57: #{_autoencoder_forward.1} parent=0 // pred_fallthru
    _
  // Predicated region
  $region58: #{_autoencoder_forward.1} parent=0 // pred_check
    _
  $region59: #{_autoencoder_forward.1} parent=0 // pred_check_branch
    %51 = sbr.rel (0) target = $region61
  $region60: #{_autoencoder_forward.1} parent=0 // pred_region
    _
  $region61: #{_autoencoder_forward.1} parent=0 // pred_fallthru
    _
  %v53 = vld [vmem:[%s0] sm:$0xff]
  %v54 = vld [vmem:[%s0 + $0x8] sm:$0xff]
  %v55 = vld [vmem:[%s0 + $0x10] sm:$0xff]
  %v56 = vld [vmem:[%s0 + $0x18] sm:$0xf]
  %v57 = vld [vmem:[%s0 + $0x1c] sm:$0xff]
  %v58 = vld [vmem:[%s0 + $0x24] sm:$0xff]
  %v59 = vld [vmem:[%s0 + $0x2c] sm:$0xff]
  %v60 = vld [vmem:[%s0 + $0x34] sm:$0xf]
  %v61 = vld [vmem:[%s1] sm:$0xf]
  %v62 = vld [vmem:[%s1 + $0x4] sm:$0xf]
  %v63 = vld [vmem:[%s1 + $0x8] sm:$0xf]
  %v64 = vld [vmem:[%s1 + $0xc] sm:$0xf]
  %v65 = vld [vmem:[%s1 + $0x10] sm:$0xf]
  %v66 = vld [vmem:[%s1 + $0x14] sm:$0xf]
  %v67 = vld [vmem:[%s1 + $0x18] sm:$0xf]
  %v68 = vld [vmem:[%s1 + $0x1c] sm:$0xf]
  %v69 = vld [vmem:[%s1 + $0x20] sm:$0xf]
  %v70 = vld [vmem:[%s1 + $0x24] sm:$0xf]
  %v71 = vld [vmem:[%s1 + $0x28] sm:$0xf]
  %v72 = vld [vmem:[%s1 + $0x2c] sm:$0xf]
  %v73 = vld [vmem:[%s1 + $0x30] sm:$0xf]
  %v74 = vld [vmem:[%s1 + $0x34] sm:$0xf]
  %v75 = vld [vmem:[%s1 + $0x38] sm:$0xf]
  %v76 = vld [vmem:[%s1 + $0x3c] sm:$0xf]
  %v77 = vld [vmem:[%s1 + $0x40] sm:$0xf]
  %v78 = vld [vmem:[%s1 + $0x44] sm:$0xf]
  %v79 = vld [vmem:[%s1 + $0x48] sm:$0xf]
  %v80 = vld [vmem:[%s1 + $0x4c] sm:$0xf]
  %v81 = vld [vmem:[%s1 + $0x50] sm:$0xf]
  %v82 = vld [vmem:[%s1 + $0x54] sm:$0xf]
  %v83 = vld [vmem:[%s1 + $0x58] sm:$0xf]
  %v84 = vld [vmem:[%s1 + $0x5c] sm:$0xf]
  %v85 = vld [vmem:[%s1 + $0x60] sm:$0xf]
  %v86 = vld [vmem:[%s1 + $0x64] sm:$0xf]
  %v87 = vld [vmem:[%s1 + $0x68] sm:$0xf]
  %v88 = vld [vmem:[%s1 + $0x6c] sm:$0xf]
  %v89 = vld [vmem:[%s1 + $0x70] sm:$0xf]
  %v90 = vld [vmem:[%s1 + $0x74] sm:$0xf]
  %v91 = vld [vmem:[%s1 + $0x78] sm:$0xf]
  %v92 = vld [vmem:[%s1 + $0x7c] sm:$0xf]
  %v93 = vld [vmem:[%s1 + $0x80] sm:$0xf]
  %v94 = vld [vmem:[%s1 + $0x84] sm:$0xf]
  %v95 = vld [vmem:[%s1 + $0x88] sm:$0xf]
  %v96 = vld [vmem:[%s1 + $0x8c] sm:$0xf]
  %v97 = vld [vmem:[%s1 + $0x90] sm:$0xf]
  %v98 = vld [vmem:[%s1 + $0x94] sm:$0xf]
  %v99 = vld [vmem:[%s1 + $0x98] sm:$0xf]
  %v100 = vld [vmem:[%s1 + $0x9c] sm:$0xf]
  %v101 = vld [vmem:[%s1 + $0xa0] sm:$0xf]
  %v102 = vld [vmem:[%s1 + $0xa4] sm:$0xf]
  %v103 = vld [vmem:[%s1 + $0xa8] sm:$0xf]
  %v104 = vld [vmem:[%s1 + $0xac] sm:$0xf]
  %v105 = vld [vmem:[%s1 + $0xb0] sm:$0xf]
  %v106 = vld [vmem:[%s1 + $0xb4] sm:$0xf]
  %v107 = vld [vmem:[%s1 + $0xb8] sm:$0xf]
  %v108 = vld [vmem:[%s1 + $0xbc] sm:$0xf]
  %v109 = vld [vmem:[%s1 + $0xc0] sm:$0xf]
  %v110 = vld [vmem:[%s1 + $0xc4] sm:$0xf]
  %v111 = vld [vmem:[%s1 + $0xc8] sm:$0xf]
  %v112 = vld [vmem:[%s1 + $0xcc] sm:$0xf]
  %v113 = vld [vmem:[%s1 + $0xd0] sm:$0xf]
  %v114 = vld [vmem:[%s1 + $0xd4] sm:$0xf]
  %v115 = vld [vmem:[%s1 + $0xd8] sm:$0xf]
  %v116 = vld [vmem:[%s1 + $0xdc] sm:$0xf]
  %v117 = vld [vmem:[%s1 + $0xe0] sm:$0xf]
  %v118 = vld [vmem:[%s1 + $0xe4] sm:$0xf]
  %v119 = vld [vmem:[%s1 + $0xe8] sm:$0xf]
  %v120 = vld [vmem:[%s1 + $0xec] sm:$0xf]
  %v121 = vld [vmem:[%s1 + $0xf0] sm:$0xf]
  %v122 = vld [vmem:[%s1 + $0xf4] sm:$0xf]
  %v123 = vld [vmem:[%s1 + $0xf8] sm:$0xf]
  %v124 = vld [vmem:[%s1 + $0xfc] sm:$0xf]
  %v125 = vld [vmem:[%s1 + $0x100] sm:$0xf]
  %v126 = vld [vmem:[%s1 + $0x104] sm:$0xf]
  %v127 = vld [vmem:[%s1 + $0x108] sm:$0xf]
  %v128 = vld [vmem:[%s1 + $0x10c] sm:$0xf]
  %v129 = vld [vmem:[%s1 + $0x110] sm:$0xf]
  %v130 = vld [vmem:[%s1 + $0x114] sm:$0xf]
  %v131 = vld [vmem:[%s1 + $0x118] sm:$0xf]
  %v132 = vld [vmem:[%s1 + $0x11c] sm:$0xf]
  %v133 = vld [vmem:[%s1 + $0x120] sm:$0xf]
  %v134 = vld [vmem:[%s1 + $0x124] sm:$0xf]
  %v135 = vld [vmem:[%s1 + $0x128] sm:$0xf]
  %v136 = vld [vmem:[%s1 + $0x12c] sm:$0xf]
  %v137 = vld [vmem:[%s1 + $0x130] sm:$0xf]
  %v138 = vld [vmem:[%s1 + $0x134] sm:$0xf]
  %v139 = vld [vmem:[%s1 + $0x138] sm:$0xf]
  %v140 = vld [vmem:[%s1 + $0x13c] sm:$0xf]
  %v141 = vld [vmem:[%s1 + $0x140] sm:$0xf]
  %v142 = vld [vmem:[%s1 + $0x144] sm:$0xf]
  %v143 = vld [vmem:[%s1 + $0x148] sm:$0xf]
  %v144 = vld [vmem:[%s1 + $0x14c] sm:$0xf]
  %v145 = vld [vmem:[%s1 + $0x150] sm:$0xf]
  %v146 = vld [vmem:[%s1 + $0x154] sm:$0xf]
  %v147 = vld [vmem:[%s1 + $0x158] sm:$0xf]
  %v148 = vld [vmem:[%s1 + $0x15c] sm:$0xf]
  %v149 = vld [vmem:[%s1 + $0x160] sm:$0xf]
  %v150 = vld [vmem:[%s1 + $0x164] sm:$0xf]
  %v151 = vld [vmem:[%s1 + $0x168] sm:$0xf]
  %v152 = vld [vmem:[%s1 + $0x16c] sm:$0xf]
  %v153 = vld [vmem:[%s1 + $0x170] sm:$0xf]
  %v154 = vld [vmem:[%s1 + $0x174] sm:$0xf]
  %v155 = vld [vmem:[%s1 + $0x178] sm:$0xf]
  %v156 = vld [vmem:[%s1 + $0x17c] sm:$0xf]
  %v157 = vld [vmem:[%s1 + $0x180] sm:$0xf]
  %v158 = vld [vmem:[%s1 + $0x184] sm:$0xf]
  %v159 = vld [vmem:[%s2] sm:$0x1]
  %v161 = vlaneseq
  %v162 = vshrl.u32 %v161, 7
  %v163 = vsub.s32 0, %v162
  %v164 = vrot.slane %v159, %v163
  %v174 = vunpack.c.l.b16 %v53
  %v175 = vunpack.c.h.b16 %v53
  %v176 = vunpack.c.l.b16 %v54
  %v177 = vunpack.c.h.b16 %v54
  %v178 = vunpack.c.l.b16 %v55
  %v179 = vunpack.c.h.b16 %v55
  %v180 = vunpack.c.l.b16 %v56
  %v181 = vunpack.c.l.b16 %v57
  %v182 = vunpack.c.h.b16 %v57
  %v183 = vunpack.c.l.b16 %v58
  %v184 = vunpack.c.h.b16 %v58
  %v185 = vunpack.c.l.b16 %v59
  %v186 = vunpack.c.h.b16 %v59
  %v187 = vunpack.c.l.b16 %v60
  %v188 = vpack.c.b16 %v181, %v174
  %v189 = vpack.c.b16 %v182, %v175
  %v190 = vpack.c.b16 %v183, %v176
  %v191 = vpack.c.b16 %v184, %v177
  %v192 = vpack.c.b16 %v185, %v178
  %v193 = vpack.c.b16 %v186, %v179
  %v194 = vpack.c.b16 %v187, %v180
  %v299 = vunpack.c.l.b16 %v61
  %v300 = vunpack.c.l.b16 %v62
  %v301 = vunpack.c.l.b16 %v63
  %v302 = vunpack.c.l.b16 %v64
  %v303 = vunpack.c.l.b16 %v65
  %v304 = vunpack.c.l.b16 %v66
  %v305 = vunpack.c.l.b16 %v67
  %v306 = vunpack.c.l.b16 %v68
  %v307 = vunpack.c.l.b16 %v69
  %v308 = vunpack.c.l.b16 %v70
  %v309 = vunpack.c.l.b16 %v71
  %v310 = vunpack.c.l.b16 %v72
  %v311 = vunpack.c.l.b16 %v73
  %v312 = vunpack.c.l.b16 %v74
  %v313 = vunpack.c.l.b16 %v75
  %v314 = vunpack.c.l.b16 %v76
  %v315 = vunpack.c.l.b16 %v77
  %v316 = vunpack.c.l.b16 %v78
  %v317 = vunpack.c.l.b16 %v79
  %v318 = vunpack.c.l.b16 %v80
  %v319 = vunpack.c.l.b16 %v81
  %v320 = vunpack.c.l.b16 %v82
  %v321 = vunpack.c.l.b16 %v83
  %v322 = vunpack.c.l.b16 %v84
  %v323 = vunpack.c.l.b16 %v85
  %v324 = vunpack.c.l.b16 %v86
  %v325 = vunpack.c.l.b16 %v87
  %v326 = vunpack.c.l.b16 %v88
  %v327 = vunpack.c.l.b16 %v89
  %v328 = vunpack.c.l.b16 %v90
  %v329 = vunpack.c.l.b16 %v91
  %v330 = vunpack.c.l.b16 %v92
  %v331 = vunpack.c.l.b16 %v93
  %v332 = vunpack.c.l.b16 %v94
  %v333 = vunpack.c.l.b16 %v95
  %v334 = vunpack.c.l.b16 %v96
  %v335 = vunpack.c.l.b16 %v97
  %v336 = vunpack.c.l.b16 %v98
  %v337 = vunpack.c.l.b16 %v99
  %v338 = vunpack.c.l.b16 %v100
  %v339 = vunpack.c.l.b16 %v101
  %v340 = vunpack.c.l.b16 %v102
  %v341 = vunpack.c.l.b16 %v103
  %v342 = vunpack.c.l.b16 %v104
  %v343 = vunpack.c.l.b16 %v105
  %v344 = vunpack.c.l.b16 %v106
  %v345 = vunpack.c.l.b16 %v107
  %v346 = vunpack.c.l.b16 %v108
  %v347 = vunpack.c.l.b16 %v109
  %v348 = vunpack.c.l.b16 %v110
  %v349 = vunpack.c.l.b16 %v111
  %v350 = vunpack.c.l.b16 %v112
  %v351 = vunpack.c.l.b16 %v113
  %v352 = vunpack.c.l.b16 %v114
  %v353 = vunpack.c.l.b16 %v115
  %v354 = vunpack.c.l.b16 %v116
  %v355 = vunpack.c.l.b16 %v117
  %v356 = vunpack.c.l.b16 %v118
  %v357 = vunpack.c.l.b16 %v119
  %v358 = vunpack.c.l.b16 %v120
  %v359 = vunpack.c.l.b16 %v121
  %v360 = vunpack.c.l.b16 %v122
  %v361 = vunpack.c.l.b16 %v123
  %v362 = vunpack.c.l.b16 %v124
  %v363 = vunpack.c.l.b16 %v125
  %v364 = vunpack.c.l.b16 %v126
  %v365 = vunpack.c.l.b16 %v127
  %v366 = vunpack.c.l.b16 %v128
  %v367 = vunpack.c.l.b16 %v129
  %v368 = vunpack.c.l.b16 %v130
  %v369 = vunpack.c.l.b16 %v131
  %v370 = vunpack.c.l.b16 %v132
  %v371 = vunpack.c.l.b16 %v133
  %v372 = vunpack.c.l.b16 %v134
  %v373 = vunpack.c.l.b16 %v135
  %v374 = vunpack.c.l.b16 %v136
  %v375 = vunpack.c.l.b16 %v137
  %v376 = vunpack.c.l.b16 %v138
  %v377 = vunpack.c.l.b16 %v139
  %v378 = vunpack.c.l.b16 %v140
  %v379 = vunpack.c.l.b16 %v141
  %v380 = vunpack.c.l.b16 %v142
  %v381 = vunpack.c.l.b16 %v143
  %v382 = vunpack.c.l.b16 %v144
  %v383 = vunpack.c.l.b16 %v145
  %v384 = vunpack.c.l.b16 %v146
  %v385 = vunpack.c.l.b16 %v147
  %v386 = vunpack.c.l.b16 %v148
  %v387 = vunpack.c.l.b16 %v149
  %v388 = vunpack.c.l.b16 %v150
  %v389 = vunpack.c.l.b16 %v151
  %v390 = vunpack.c.l.b16 %v152
  %v391 = vunpack.c.l.b16 %v153
  %v392 = vunpack.c.l.b16 %v154
  %v393 = vunpack.c.l.b16 %v155
  %v394 = vunpack.c.l.b16 %v156
  %v395 = vunpack.c.l.b16 %v157
  %v396 = vunpack.c.l.b16 %v158
  %v397 = vpack.c.b16 %v300, %v299
  %v398 = vpack.c.b16 %v302, %v301
  %v399 = vpack.c.b16 %v304, %v303
  %v400 = vpack.c.b16 %v306, %v305
  %v401 = vpack.c.b16 %v308, %v307
  %v402 = vpack.c.b16 %v310, %v309
  %v403 = vpack.c.b16 %v312, %v311
  %v404 = vpack.c.b16 %v314, %v313
  %v405 = vpack.c.b16 %v316, %v315
  %v406 = vpack.c.b16 %v318, %v317
  %v407 = vpack.c.b16 %v320, %v319
  %v408 = vpack.c.b16 %v322, %v321
  %v409 = vpack.c.b16 %v324, %v323
  %v410 = vpack.c.b16 %v326, %v325
  %v411 = vpack.c.b16 %v328, %v327
  %v412 = vpack.c.b16 %v330, %v329
  %v413 = vpack.c.b16 %v332, %v331
  %v414 = vpack.c.b16 %v334, %v333
  %v415 = vpack.c.b16 %v336, %v335
  %v416 = vpack.c.b16 %v338, %v337
  %v417 = vpack.c.b16 %v340, %v339
  %v418 = vpack.c.b16 %v342, %v341
  %v419 = vpack.c.b16 %v344, %v343
  %v420 = vpack.c.b16 %v346, %v345
  %v421 = vpack.c.b16 %v348, %v347
  %v422 = vpack.c.b16 %v350, %v349
  %v423 = vpack.c.b16 %v352, %v351
  %v424 = vpack.c.b16 %v354, %v353
  %v425 = vpack.c.b16 %v356, %v355
  %v426 = vpack.c.b16 %v358, %v357
  %v427 = vpack.c.b16 %v360, %v359
  %v428 = vpack.c.b16 %v362, %v361
  %v429 = vpack.c.b16 %v364, %v363
  %v430 = vpack.c.b16 %v366, %v365
  %v431 = vpack.c.b16 %v368, %v367
  %v432 = vpack.c.b16 %v370, %v369
  %v433 = vpack.c.b16 %v372, %v371
  %v434 = vpack.c.b16 %v374, %v373
  %v435 = vpack.c.b16 %v376, %v375
  %v436 = vpack.c.b16 %v378, %v377
  %v437 = vpack.c.b16 %v380, %v379
  %v438 = vpack.c.b16 %v382, %v381
  %v439 = vpack.c.b16 %v384, %v383
  %v440 = vpack.c.b16 %v386, %v385
  %v441 = vpack.c.b16 %v388, %v387
  %v442 = vpack.c.b16 %v390, %v389
  %v443 = vpack.c.b16 %v392, %v391
  %v444 = vpack.c.b16 %v394, %v393
  %v445 = vpack.c.b16 %v396, %v395
  %vm495 = vcmask 130048
  %v497 = vsel %vm495, %v194, 0
  %499 = vmatprep.subr.bf16.mxu0 0
  %500 = vmatpush1.bf16.msra.mxu0 %v404
  %501 = vmatprep.subr.bf16.mxu0 0
  %502 = vmatpush1.bf16.msra.mxu0 %v403
  %503 = vmatprep.subr.bf16.mxu0 0
  %504 = vmatpush1.bf16.msra.mxu0 %v402
  %505 = vmatprep.subr.bf16.mxu0 0
  %506 = vmatpush1.bf16.msra.mxu0 %v401
  %507 = vmatprep.subr.bf16.mxu0 0
  %508 = vmatpush1.bf16.msra.mxu0 %v400
  %509 = vmatprep.subr.bf16.mxu0 0
  %510 = vmatpush1.bf16.msra.mxu0 %v399
  %511 = vmatprep.subr.bf16.mxu0 0
  %512 = vmatpush1.bf16.msra.mxu0 %v398
  %513 = vmatprep.subr.bf16.mxu0 0
  %514 = vmatpush1.bf16.msra.mxu0 %v397
  %515 = vmatprep.subr.bf16.mxu0 0
  %516 = vmatpush2.bf16.msra.mxu0 %v412
  %517 = vmatprep.subr.bf16.mxu0 0
  %518 = vmatpush2.bf16.msra.mxu0 %v411
  %519 = vmatprep.subr.bf16.mxu0 0
  %520 = vmatpush2.bf16.msra.mxu0 %v410
  %521 = vmatprep.subr.bf16.mxu0 0
  %522 = vmatpush2.bf16.msra.mxu0 %v409
  %523 = vmatprep.subr.bf16.mxu0 0
  %524 = vmatpush2.bf16.msra.mxu0 %v408
  %525 = vmatprep.subr.bf16.mxu0 0
  %526 = vmatpush2.bf16.msra.mxu0 %v407
  %527 = vmatprep.subr.bf16.mxu0 0
  %528 = vmatpush2.bf16.msra.mxu0 %v406
  %529 = vmatprep.subr.bf16.mxu0 0
  %530 = vmatpush2.bf16.msra.mxu0 %v405
  %531 = vmatprep.mubr.bf16.mxu0 %v189
  %532 = vmatmul.mubr.bf16.gmra.mxu0 %v188
  %v533 = vpop.f32.mrf.mxu0
  %v534 = vadd.f32 %v164, %v533
  %v535 = vpop.f32.mrf.mxu0
  %v536 = vpop.f32.mrf.mxu0
  %v537 = vadd.f32 %v164, %v536
  %v538 = vpop.f32.mrf.mxu0
  %539 = vdwg.mxu0
  %540 = vmatprep.subr.bf16.mxu0 0
  %541 = vmatpush1.bf16.msra.mxu0 %v420
  %542 = vmatprep.subr.bf16.mxu0 0
  %543 = vmatpush1.bf16.msra.mxu0 %v419
  %544 = vmatprep.subr.bf16.mxu0 0
  %545 = vmatpush1.bf16.msra.mxu0 %v418
  %546 = vmatprep.subr.bf16.mxu0 0
  %547 = vmatpush1.bf16.msra.mxu0 %v417
  %548 = vmatprep.subr.bf16.mxu0 0
  %549 = vmatpush1.bf16.msra.mxu0 %v416
  %550 = vmatprep.subr.bf16.mxu0 0
  %551 = vmatpush1.bf16.msra.mxu0 %v415
  %552 = vmatprep.subr.bf16.mxu0 0
  %553 = vmatpush1.bf16.msra.mxu0 %v414
  %554 = vmatprep.subr.bf16.mxu0 0
  %555 = vmatpush1.bf16.msra.mxu0 %v413
  %556 = vmatprep.subr.bf16.mxu0 0
  %557 = vmatpush2.bf16.msra.mxu0 %v428
  %558 = vmatprep.subr.bf16.mxu0 0
  %559 = vmatpush2.bf16.msra.mxu0 %v427
  %560 = vmatprep.subr.bf16.mxu0 0
  %561 = vmatpush2.bf16.msra.mxu0 %v426
  %562 = vmatprep.subr.bf16.mxu0 0
  %563 = vmatpush2.bf16.msra.mxu0 %v425
  %564 = vmatprep.subr.bf16.mxu0 0
  %565 = vmatpush2.bf16.msra.mxu0 %v424
  %566 = vmatprep.subr.bf16.mxu0 0
  %567 = vmatpush2.bf16.msra.mxu0 %v423
  %568 = vmatprep.subr.bf16.mxu0 0
  %569 = vmatpush2.bf16.msra.mxu0 %v422
  %570 = vmatprep.subr.bf16.mxu0 0
  %571 = vmatpush2.bf16.msra.mxu0 %v421
  %572 = vmatprep.mubr.bf16.mxu0 %v191
  %573 = vmatmul.mubr.bf16.gmra.mxu0 %v190
  %v574 = vpop.f32.mrf.mxu0
  %v575 = vadd.f32 %v534, %v574
  %v576 = vpop.f32.mrf.mxu0
  %v577 = vpop.f32.mrf.mxu0
  %v578 = vadd.f32 %v537, %v577
  %v579 = vpop.f32.mrf.mxu0
  %580 = vdwg.mxu0
  %581 = vmatprep.subr.bf16.mxu0 0
  %582 = vmatpush1.bf16.msra.mxu0 %v436
  %583 = vmatprep.subr.bf16.mxu0 0
  %584 = vmatpush1.bf16.msra.mxu0 %v435
  %585 = vmatprep.subr.bf16.mxu0 0
  %586 = vmatpush1.bf16.msra.mxu0 %v434
  %587 = vmatprep.subr.bf16.mxu0 0
  %588 = vmatpush1.bf16.msra.mxu0 %v433
  %589 = vmatprep.subr.bf16.mxu0 0
  %590 = vmatpush1.bf16.msra.mxu0 %v432
  %591 = vmatprep.subr.bf16.mxu0 0
  %592 = vmatpush1.bf16.msra.mxu0 %v431
  %593 = vmatprep.subr.bf16.mxu0 0
  %594 = vmatpush1.bf16.msra.mxu0 %v430
  %595 = vmatprep.subr.bf16.mxu0 0
  %596 = vmatpush1.bf16.msra.mxu0 %v429
  %597 = vmatprep.subr.bf16.mxu0 0
  %598 = vmatpush2.bf16.msra.mxu0 %v444
  %599 = vmatprep.subr.bf16.mxu0 0
  %600 = vmatpush2.bf16.msra.mxu0 %v443
  %601 = vmatprep.subr.bf16.mxu0 0
  %602 = vmatpush2.bf16.msra.mxu0 %v442
  %603 = vmatprep.subr.bf16.mxu0 0
  %604 = vmatpush2.bf16.msra.mxu0 %v441
  %605 = vmatprep.subr.bf16.mxu0 0
  %606 = vmatpush2.bf16.msra.mxu0 %v440
  %607 = vmatprep.subr.bf16.mxu0 0
  %608 = vmatpush2.bf16.msra.mxu0 %v439
  %609 = vmatprep.subr.bf16.mxu0 0
  %610 = vmatpush2.bf16.msra.mxu0 %v438
  %611 = vmatprep.subr.bf16.mxu0 0
  %612 = vmatpush2.bf16.msra.mxu0 %v437
  %613 = vmatprep.mubr.bf16.mxu0 %v193
  %614 = vmatmul.mubr.bf16.gmra.mxu0 %v192
  %v615 = vpop.f32.mrf.mxu0
  %v616 = vadd.f32 %v575, %v615
  %v617 = vpop.f32.mrf.mxu0
  %v618 = vpop.f32.mrf.mxu0
  %v619 = vadd.f32 %v578, %v618
  %v620 = vpop.f32.mrf.mxu0
  %621 = vdwg.mxu0
  %622 = vmatprep.subr.bf16.mxu0 0
  %623 = vmatpush1.bf16.msra.mxu0 0
  %624 = vmatprep.subr.bf16.mxu0 0
  %625 = vmatpush1.bf16.msra.mxu0 0
  %626 = vmatprep.subr.bf16.mxu0 0
  %627 = vmatpush1.bf16.msra.mxu0 0
  %628 = vmatprep.subr.bf16.mxu0 0
  %629 = vmatpush1.bf16.msra.mxu0 0
  %630 = vmatprep.subr.bf16.mxu0 0
  %631 = vmatpush1.bf16.msra.mxu0 0
  %632 = vmatprep.subr.bf16.mxu0 0
  %633 = vmatpush1.bf16.msra.mxu0 0
  %634 = vmatprep.subr.bf16.mxu0 0
  %635 = vmatpush1.bf16.msra.mxu0 0
  %636 = vmatprep.subr.bf16.mxu0 0
  %637 = vmatpush1.bf16.msra.mxu0 %v445
  %638 = vmatprep.subr.bf16.mxu0 0
  %639 = vmatpush2.bf16.msra.mxu0 0
  %640 = vmatprep.subr.bf16.mxu0 0
  %641 = vmatpush2.bf16.msra.mxu0 0
  %642 = vmatprep.subr.bf16.mxu0 0
  %643 = vmatpush2.bf16.msra.mxu0 0
  %644 = vmatprep.subr.bf16.mxu0 0
  %645 = vmatpush2.bf16.msra.mxu0 0
  %646 = vmatprep.subr.bf16.mxu0 0
  %647 = vmatpush2.bf16.msra.mxu0 0
  %648 = vmatprep.subr.bf16.mxu0 0
  %649 = vmatpush2.bf16.msra.mxu0 0
  %650 = vmatprep.subr.bf16.mxu0 0
  %651 = vmatpush2.bf16.msra.mxu0 0
  %652 = vmatprep.subr.bf16.mxu0 0
  %653 = vmatpush2.bf16.msra.mxu0 0
  %654 = vmatprep.mubr.bf16.mxu0 0
  %655 = vmatmul.mubr.bf16.gmra.mxu0 %v497
  %v656 = vpop.f32.mrf.mxu0
  %v657 = vadd.f32 %v616, %v656
  %v658 = vpop.f32.mrf.mxu0
  %v659 = vpop.f32.mrf.mxu0
  %v660 = vadd.f32 %v619, %v659
  %v661 = vpop.f32.mrf.mxu0
  %662 = vdwg.mxu0
  %v663 = vtanh.pop %v657
  %v664 = vtanh.pop %v660
  %v665 = vpack.c.bf16 %v664, %v663
  %v666 = vld [vmem:[%s3] sm:$0xf]
  %v667 = vld [vmem:[%s3 + $0x4] sm:$0xf]
  %v668 = vld [vmem:[%s3 + $0x8] sm:$0xf]
  %v669 = vld [vmem:[%s3 + $0xc] sm:$0xf]
  %v670 = vld [vmem:[%s3 + $0x10] sm:$0xf]
  %v671 = vld [vmem:[%s3 + $0x14] sm:$0xf]
  %v672 = vld [vmem:[%s3 + $0x18] sm:$0xf]
  %v673 = vld [vmem:[%s3 + $0x1c] sm:$0xf]
  %v674 = vld [vmem:[%s3 + $0x20] sm:$0xf]
  %v675 = vld [vmem:[%s3 + $0x24] sm:$0xf]
  %v676 = vld [vmem:[%s3 + $0x28] sm:$0xf]
  %v677 = vld [vmem:[%s3 + $0x2c] sm:$0xf]
  %v678 = vld [vmem:[%s3 + $0x30] sm:$0xf]
  %v679 = vld [vmem:[%s3 + $0x34] sm:$0xf]
  %v680 = vld [vmem:[%s3 + $0x38] sm:$0xf]
  %v681 = vld [vmem:[%s3 + $0x3c] sm:$0xf]
  %v682 = vld [vmem:[%s4] sm:$0x1]
  %v684 = vlaneseq
  %v685 = vshrl.u32 %v684, 7
  %v686 = vsub.s32 0, %v685
  %v687 = vrot.slane %v682, %v686
  %v705 = vunpack.c.l.b16 %v666
  %v706 = vunpack.c.l.b16 %v667
  %v707 = vunpack.c.l.b16 %v668
  %v708 = vunpack.c.l.b16 %v669
  %v709 = vunpack.c.l.b16 %v670
  %v710 = vunpack.c.l.b16 %v671
  %v711 = vunpack.c.l.b16 %v672
  %v712 = vunpack.c.l.b16 %v673
  %v713 = vunpack.c.l.b16 %v674
  %v714 = vunpack.c.l.b16 %v675
  %v715 = vunpack.c.l.b16 %v676
  %v716 = vunpack.c.l.b16 %v677
  %v717 = vunpack.c.l.b16 %v678
  %v718 = vunpack.c.l.b16 %v679
  %v719 = vunpack.c.l.b16 %v680
  %v720 = vunpack.c.l.b16 %v681
  %v721 = vpack.c.b16 %v706, %v705
  %v722 = vpack.c.b16 %v708, %v707
  %v723 = vpack.c.b16 %v710, %v709
  %v724 = vpack.c.b16 %v712, %v711
  %v725 = vpack.c.b16 %v714, %v713
  %v726 = vpack.c.b16 %v716, %v715
  %v727 = vpack.c.b16 %v718, %v717
  %v728 = vpack.c.b16 %v720, %v719
  %737 = vmatprep.subr.bf16.mxu0 0
  %738 = vmatpush1.bf16.msra.mxu0 %v728
  %739 = vmatprep.subr.bf16.mxu0 0
  %740 = vmatpush1.bf16.msra.mxu0 %v727
  %741 = vmatprep.subr.bf16.mxu0 0
  %742 = vmatpush1.bf16.msra.mxu0 %v726
  %743 = vmatprep.subr.bf16.mxu0 0
  %744 = vmatpush1.bf16.msra.mxu0 %v725
  %745 = vmatprep.subr.bf16.mxu0 0
  %746 = vmatpush1.bf16.msra.mxu0 %v724
  %747 = vmatprep.subr.bf16.mxu0 0
  %748 = vmatpush1.bf16.msra.mxu0 %v723
  %749 = vmatprep.subr.bf16.mxu0 0
  %750 = vmatpush1.bf16.msra.mxu0 %v722
  %751 = vmatprep.subr.bf16.mxu0 0
  %752 = vmatpush1.bf16.msra.mxu0 %v721
  %753 = vmatprep.subr.bf16.mxu0 0
  %754 = vmatpush2.bf16.msra.mxu0 0
  %755 = vmatprep.subr.bf16.mxu0 0
  %756 = vmatpush2.bf16.msra.mxu0 0
  %757 = vmatprep.subr.bf16.mxu0 0
  %758 = vmatpush2.bf16.msra.mxu0 0
  %759 = vmatprep.subr.bf16.mxu0 0
  %760 = vmatpush2.bf16.msra.mxu0 0
  %761 = vmatprep.subr.bf16.mxu0 0
  %762 = vmatpush2.bf16.msra.mxu0 0
  %763 = vmatprep.subr.bf16.mxu0 0
  %764 = vmatpush2.bf16.msra.mxu0 0
  %765 = vmatprep.subr.bf16.mxu0 0
  %766 = vmatpush2.bf16.msra.mxu0 0
  %767 = vmatprep.subr.bf16.mxu0 0
  %768 = vmatpush2.bf16.msra.mxu0 0
  %769 = vmatprep.mubr.bf16.mxu0 0
  %770 = vmatmul.mubr.bf16.gmra.mxu0 %v665
  %v771 = vpop.f32.mrf.mxu0
  %v772 = vadd.f32 %v687, %v771
  %v773 = vpop.f32.mrf.mxu0
  %v774 = vpop.f32.mrf.mxu0
  %v775 = vadd.f32 %v687, %v774
  %v776 = vpop.f32.mrf.mxu0
  %777 = vdwg.mxu0
  %v778 = vtanh.pop %v772
  %v779 = vtanh.pop %v775
  %v780 = vpack.c.bf16 %v779, %v778
  %v781 = vld [vmem:[%s5] sm:$0xf]
  %v782 = vld [vmem:[%s5 + $0x4] sm:$0xf]
  %v783 = vld [vmem:[%s5 + $0x8] sm:$0xf]
  %v784 = vld [vmem:[%s5 + $0xc] sm:$0xf]
  %v785 = vld [vmem:[%s5 + $0x10] sm:$0xf]
  %v786 = vld [vmem:[%s5 + $0x14] sm:$0xf]
  %v787 = vld [vmem:[%s5 + $0x18] sm:$0xf]
  %v788 = vld [vmem:[%s5 + $0x1c] sm:$0xf]
  %v789 = vld [vmem:[%s6] sm:$0x1]
  %v791 = vlaneseq
  %v792 = vshrl.u32 %v791, 7
  %v793 = vsub.s32 0, %v792
  %v794 = vrot.slane %v789, %v793
  %v804 = vunpack.c.l.b16 %v781
  %v805 = vunpack.c.l.b16 %v782
  %v806 = vunpack.c.l.b16 %v783
  %v807 = vunpack.c.l.b16 %v784
  %v808 = vunpack.c.l.b16 %v785
  %v809 = vunpack.c.l.b16 %v786
  %v810 = vunpack.c.l.b16 %v787
  %v811 = vunpack.c.l.b16 %v788
  %v812 = vpack.c.b16 %v805, %v804
  %v813 = vpack.c.b16 %v807, %v806
  %v814 = vpack.c.b16 %v809, %v808
  %v815 = vpack.c.b16 %v811, %v810
  %vm820 = vcmask 523264
  %v822 = vsel %vm820, %v780, 0
  %824 = vmatprep.subr.bf16.mxu0 0
  %825 = vmatpush1.bf16.msra.mxu0 0
  %826 = vmatprep.subr.bf16.mxu0 0
  %827 = vmatpush1.bf16.msra.mxu0 0
  %828 = vmatprep.subr.bf16.mxu0 0
  %829 = vmatpush1.bf16.msra.mxu0 0
  %830 = vmatprep.subr.bf16.mxu0 0
  %831 = vmatpush1.bf16.msra.mxu0 0
  %832 = vmatprep.subr.bf16.mxu0 0
  %833 = vmatpush1.bf16.msra.mxu0 %v815
  %834 = vmatprep.subr.bf16.mxu0 0
  %835 = vmatpush1.bf16.msra.mxu0 %v814
  %836 = vmatprep.subr.bf16.mxu0 0
  %837 = vmatpush1.bf16.msra.mxu0 %v813
  %838 = vmatprep.subr.bf16.mxu0 0
  %839 = vmatpush1.bf16.msra.mxu0 %v812
  %840 = vmatprep.subr.bf16.mxu0 0
  %841 = vmatpush2.bf16.msra.mxu0 0
  %842 = vmatprep.subr.bf16.mxu0 0
  %843 = vmatpush2.bf16.msra.mxu0 0
  %844 = vmatprep.subr.bf16.mxu0 0
  %845 = vmatpush2.bf16.msra.mxu0 0
  %846 = vmatprep.subr.bf16.mxu0 0
  %847 = vmatpush2.bf16.msra.mxu0 0
  %848 = vmatprep.subr.bf16.mxu0 0
  %849 = vmatpush2.bf16.msra.mxu0 0
  %850 = vmatprep.subr.bf16.mxu0 0
  %851 = vmatpush2.bf16.msra.mxu0 0
  %852 = vmatprep.subr.bf16.mxu0 0
  %853 = vmatpush2.bf16.msra.mxu0 0
  %854 = vmatprep.subr.bf16.mxu0 0
  %855 = vmatpush2.bf16.msra.mxu0 0
  %856 = vmatprep.mubr.bf16.mxu0 0
  %857 = vmatmul.mubr.bf16.gmra.mxu0 %v822
  %v858 = vpop.f32.mrf.mxu0
  %v859 = vadd.f32 %v794, %v858
  %v860 = vpop.f32.mrf.mxu0
  %v861 = vpop.f32.mrf.mxu0
  %v862 = vadd.f32 %v794, %v861
  %v863 = vpop.f32.mrf.mxu0
  %864 = vdwg.mxu0
  %v865 = vtanh.pop %v859
  %v866 = vtanh.pop %v862
  %v867 = vpack.c.bf16 %v866, %v865
  %v868 = vld [vmem:[%s7] sm:$0xf]
  %v869 = vld [vmem:[%s7 + $0x4] sm:$0x3]
  %v870 = vld [vmem:[%s8] sm:$0x1]
  %v872 = vlaneseq
  %v873 = vshrl.u32 %v872, 7
  %v874 = vsub.s32 0, %v873
  %v875 = vrot.slane %v870, %v874
  %v879 = vunpack.c.l.b16 %v868
  %v880 = vunpack.c.l.b16 %v869
  %v881 = vpack.c.b16 %v880, %v879
  %vm882 = vcmask 97280
  %v884 = vsel %vm882, %v867, 0
  %vm886 = vcmask 1045504
  %v888 = vsel %vm886, %v881, 0
  %890 = vmatprep.subr.bf16.mxu0 0
  %891 = vmatpush1.bf16.msra.mxu0 0
  %892 = vmatprep.subr.bf16.mxu0 0
  %893 = vmatpush1.bf16.msra.mxu0 0
  %894 = vmatprep.subr.bf16.mxu0 0
  %895 = vmatpush1.bf16.msra.mxu0 0
  %896 = vmatprep.subr.bf16.mxu0 0
  %897 = vmatpush1.bf16.msra.mxu0 0
  %898 = vmatprep.subr.bf16.mxu0 0
  %899 = vmatpush1.bf16.msra.mxu0 0
  %900 = vmatprep.subr.bf16.mxu0 0
  %901 = vmatpush1.bf16.msra.mxu0 0
  %902 = vmatprep.subr.bf16.mxu0 0
  %903 = vmatpush1.bf16.msra.mxu0 0
  %904 = vmatprep.subr.bf16.mxu0 0
  %905 = vmatpush1.bf16.msra.mxu0 %v888
  %906 = vmatprep.subr.bf16.mxu0 0
  %907 = vmatpush2.bf16.msra.mxu0 0
  %908 = vmatprep.subr.bf16.mxu0 0
  %909 = vmatpush2.bf16.msra.mxu0 0
  %910 = vmatprep.subr.bf16.mxu0 0
  %911 = vmatpush2.bf16.msra.mxu0 0
  %912 = vmatprep.subr.bf16.mxu0 0
  %913 = vmatpush2.bf16.msra.mxu0 0
  %914 = vmatprep.subr.bf16.mxu0 0
  %915 = vmatpush2.bf16.msra.mxu0 0
  %916 = vmatprep.subr.bf16.mxu0 0
  %917 = vmatpush2.bf16.msra.mxu0 0
  %918 = vmatprep.subr.bf16.mxu0 0
  %919 = vmatpush2.bf16.msra.mxu0 0
  %920 = vmatprep.subr.bf16.mxu0 0
  %921 = vmatpush2.bf16.msra.mxu0 0
  %922 = vmatprep.mubr.bf16.mxu0 0
  %923 = vmatmul.mubr.bf16.gmra.mxu0 %v884
  %v924 = vpop.f32.mrf.mxu0
  %v925 = vadd.f32 %v875, %v924
  %v926 = vpop.f32.mrf.mxu0
  %v927 = vpop.f32.mrf.mxu0
  %v928 = vadd.f32 %v875, %v927
  %v929 = vpop.f32.mrf.mxu0
  %930 = vdwg.mxu0
  %v931 = vpack.c.bf16 %v928, %v925
  %v933 = vunpack.c.l.b16 %v931
  %v934 = vunpack.c.h.b16 %v931
  %v935 = vpack.c.b16 %v933, %v933
  %v936 = vpack.c.b16 %v934, %v934
  %939 = vst [vmem:[%s15] sm:$0xf] %v935
  %940 = vst [vmem:[%s15 + $0x4] sm:$0xf] %v936
  %v941 = vtanh.pop %v925
  %v942 = vtanh.pop %v928
  %v943 = vpack.c.bf16 %v942, %v941
  %v944 = vld [vmem:[%s9] sm:$0xf]
  %v945 = vld [vmem:[%s9 + $0x4] sm:$0x3]
  %v946 = vld [vmem:[%s10] sm:$0x1]
  %v948 = vlaneseq
  %v949 = vshrl.u32 %v948, 7
  %v950 = vsub.s32 0, %v949
  %v951 = vrot.slane %v946, %v950
  %v955 = vunpack.c.l.b16 %v944
  %v956 = vunpack.c.l.b16 %v945
  %v957 = vpack.c.b16 %v956, %v955
  %v959 = vsel %vm882, %v943, 0
  %v962 = vsel %vm886, %v957, 0
  %964 = vmatprep.subr.bf16.mxu0 0
  %965 = vmatpush1.bf16.msra.mxu0 0
  %966 = vmatprep.subr.bf16.mxu0 0
  %967 = vmatpush1.bf16.msra.mxu0 0
  %968 = vmatprep.subr.bf16.mxu0 0
  %969 = vmatpush1.bf16.msra.mxu0 0
  %970 = vmatprep.subr.bf16.mxu0 0
  %971 = vmatpush1.bf16.msra.mxu0 0
  %972 = vmatprep.subr.bf16.mxu0 0
  %973 = vmatpush1.bf16.msra.mxu0 0
  %974 = vmatprep.subr.bf16.mxu0 0
  %975 = vmatpush1.bf16.msra.mxu0 0
  %976 = vmatprep.subr.bf16.mxu0 0
  %977 = vmatpush1.bf16.msra.mxu0 0
  %978 = vmatprep.subr.bf16.mxu0 0
  %979 = vmatpush1.bf16.msra.mxu0 %v962
  %980 = vmatprep.subr.bf16.mxu0 0
  %981 = vmatpush2.bf16.msra.mxu0 0
  %982 = vmatprep.subr.bf16.mxu0 0
  %983 = vmatpush2.bf16.msra.mxu0 0
  %984 = vmatprep.subr.bf16.mxu0 0
  %985 = vmatpush2.bf16.msra.mxu0 0
  %986 = vmatprep.subr.bf16.mxu0 0
  %987 = vmatpush2.bf16.msra.mxu0 0
  %988 = vmatprep.subr.bf16.mxu0 0
  %989 = vmatpush2.bf16.msra.mxu0 0
  %990 = vmatprep.subr.bf16.mxu0 0
  %991 = vmatpush2.bf16.msra.mxu0 0
  %992 = vmatprep.subr.bf16.mxu0 0
  %993 = vmatpush2.bf16.msra.mxu0 0
  %994 = vmatprep.subr.bf16.mxu0 0
  %995 = vmatpush2.bf16.msra.mxu0 0
  %996 = vmatprep.mubr.bf16.mxu0 0
  %997 = vmatmul.mubr.bf16.gmra.mxu0 %v959
  %v998 = vpop.f32.mrf.mxu0
  %v999 = vadd.f32 %v951, %v998
  %v1000 = vpop.f32.mrf.mxu0
  %v1001 = vpop.f32.mrf.mxu0
  %v1002 = vadd.f32 %v951, %v1001
  %v1003 = vpop.f32.mrf.mxu0
  %1004 = vdwg.mxu0
  %v1005 = vtanh.pop %v999
  %v1006 = vtanh.pop %v1002
  %v1007 = vpack.c.bf16 %v1006, %v1005
  %v1008 = vld [vmem:[%s11] sm:$0xf]
  %v1009 = vld [vmem:[%s11 + $0x4] sm:$0xf]
  %v1010 = vld [vmem:[%s11 + $0x8] sm:$0xf]
  %v1011 = vld [vmem:[%s11 + $0xc] sm:$0xf]
  %v1012 = vld [vmem:[%s11 + $0x10] sm:$0xf]
  %v1013 = vld [vmem:[%s11 + $0x14] sm:$0xf]
  %v1014 = vld [vmem:[%s11 + $0x18] sm:$0xf]
  %v1015 = vld [vmem:[%s11 + $0x1c] sm:$0xf]
  %v1016 = vld [vmem:[%s12] sm:$0x1]
  %v1018 = vlaneseq
  %v1019 = vshrl.u32 %v1018, 7
  %v1020 = vsub.s32 0, %v1019
  %v1021 = vrot.slane %v1016, %v1020
  %v1031 = vunpack.c.l.b16 %v1008
  %v1032 = vunpack.c.l.b16 %v1009
  %v1033 = vunpack.c.l.b16 %v1010
  %v1034 = vunpack.c.l.b16 %v1011
  %v1035 = vunpack.c.l.b16 %v1012
  %v1036 = vunpack.c.l.b16 %v1013
  %v1037 = vunpack.c.l.b16 %v1014
  %v1038 = vunpack.c.l.b16 %v1015
  %v1039 = vpack.c.b16 %v1032, %v1031
  %v1040 = vpack.c.b16 %v1034, %v1033
  %v1041 = vpack.c.b16 %v1036, %v1035
  %v1042 = vpack.c.b16 %v1038, %v1037
  %v1048 = vsel %vm820, %v1007, 0
  %1050 = vmatprep.subr.bf16.mxu0 0
  %1051 = vmatpush1.bf16.msra.mxu0 0
  %1052 = vmatprep.subr.bf16.mxu0 0
  %1053 = vmatpush1.bf16.msra.mxu0 0
  %1054 = vmatprep.subr.bf16.mxu0 0
  %1055 = vmatpush1.bf16.msra.mxu0 0
  %1056 = vmatprep.subr.bf16.mxu0 0
  %1057 = vmatpush1.bf16.msra.mxu0 0
  %1058 = vmatprep.subr.bf16.mxu0 0
  %1059 = vmatpush1.bf16.msra.mxu0 %v1042
  %1060 = vmatprep.subr.bf16.mxu0 0
  %1061 = vmatpush1.bf16.msra.mxu0 %v1041
  %1062 = vmatprep.subr.bf16.mxu0 0
  %1063 = vmatpush1.bf16.msra.mxu0 %v1040
  %1064 = vmatprep.subr.bf16.mxu0 0
  %1065 = vmatpush1.bf16.msra.mxu0 %v1039
  %1066 = vmatprep.subr.bf16.mxu0 0
  %1067 = vmatpush2.bf16.msra.mxu0 0
  %1068 = vmatprep.subr.bf16.mxu0 0
  %1069 = vmatpush2.bf16.msra.mxu0 0
  %1070 = vmatprep.subr.bf16.mxu0 0
  %1071 = vmatpush2.bf16.msra.mxu0 0
  %1072 = vmatprep.subr.bf16.mxu0 0
  %1073 = vmatpush2.bf16.msra.mxu0 0
  %1074 = vmatprep.subr.bf16.mxu0 0
  %1075 = vmatpush2.bf16.msra.mxu0 0
  %1076 = vmatprep.subr.bf16.mxu0 0
  %1077 = vmatpush2.bf16.msra.mxu0 0
  %1078 = vmatprep.subr.bf16.mxu0 0
  %1079 = vmatpush2.bf16.msra.mxu0 0
  %1080 = vmatprep.subr.bf16.mxu0 0
  %1081 = vmatpush2.bf16.msra.mxu0 0
  %1082 = vmatprep.mubr.bf16.mxu0 0
  %1083 = vmatmul.mubr.bf16.gmra.mxu0 %v1048
  %v1084 = vpop.f32.mrf.mxu0
  %v1085 = vadd.f32 %v1021, %v1084
  %v1086 = vpop.f32.mrf.mxu0
  %v1087 = vpop.f32.mrf.mxu0
  %v1088 = vadd.f32 %v1021, %v1087
  %v1089 = vpop.f32.mrf.mxu0
  %1090 = vdwg.mxu0
  %v1091 = vtanh.pop %v1085
  %v1092 = vtanh.pop %v1088
  %v1093 = vpack.c.bf16 %v1092, %v1091
  %v1094 = vld [vmem:[%s13] sm:$0xff]
  %v1095 = vld [vmem:[%s13 + $0x8] sm:$0xff]
  %v1096 = vld [vmem:[%s13 + $0x10] sm:$0xff]
  %v1097 = vld [vmem:[%s13 + $0x18] sm:$0xf]
  %v1098 = vld [vmem:[%s13 + $0x1c] sm:$0xff]
  %v1099 = vld [vmem:[%s13 + $0x24] sm:$0xff]
  %v1100 = vld [vmem:[%s13 + $0x2c] sm:$0xff]
  %v1101 = vld [vmem:[%s13 + $0x34] sm:$0xf]
  %v1102 = vld [vmem:[%s13 + $0x38] sm:$0xff]
  %v1103 = vld [vmem:[%s13 + $0x40] sm:$0xff]
  %v1104 = vld [vmem:[%s13 + $0x48] sm:$0xff]
  %v1105 = vld [vmem:[%s13 + $0x50] sm:$0xf]
  %v1106 = vld [vmem:[%s13 + $0x54] sm:$0xff]
  %v1107 = vld [vmem:[%s13 + $0x5c] sm:$0xff]
  %v1108 = vld [vmem:[%s13 + $0x64] sm:$0xff]
  %v1109 = vld [vmem:[%s13 + $0x6c] sm:$0xf]
  %v1110 = vld [vmem:[%s13 + $0x70] sm:$0xff]
  %v1111 = vld [vmem:[%s13 + $0x78] sm:$0xff]
  %v1112 = vld [vmem:[%s13 + $0x80] sm:$0xff]
  %v1113 = vld [vmem:[%s13 + $0x88] sm:$0xf]
  %v1114 = vld [vmem:[%s13 + $0x8c] sm:$0xff]
  %v1115 = vld [vmem:[%s13 + $0x94] sm:$0xff]
  %v1116 = vld [vmem:[%s13 + $0x9c] sm:$0xff]
  %v1117 = vld [vmem:[%s13 + $0xa4] sm:$0xf]
  %v1118 = vld [vmem:[%s13 + $0xa8] sm:$0xff]
  %v1119 = vld [vmem:[%s13 + $0xb0] sm:$0xff]
  %v1120 = vld [vmem:[%s13 + $0xb8] sm:$0xff]
  %v1121 = vld [vmem:[%s13 + $0xc0] sm:$0xf]
  %v1122 = vld [vmem:[%s13 + $0xc4] sm:$0xff]
  %v1123 = vld [vmem:[%s13 + $0xcc] sm:$0xff]
  %v1124 = vld [vmem:[%s13 + $0xd4] sm:$0xff]
  %v1125 = vld [vmem:[%s13 + $0xdc] sm:$0xf]
  %v1126 = vld [vmem:[%s13 + $0xe0] sm:$0xff]
  %v1127 = vld [vmem:[%s13 + $0xe8] sm:$0xff]
  %v1128 = vld [vmem:[%s13 + $0xf0] sm:$0xff]
  %v1129 = vld [vmem:[%s13 + $0xf8] sm:$0xf]
  %v1130 = vld [vmem:[%s13 + $0xfc] sm:$0xff]
  %v1131 = vld [vmem:[%s13 + $0x104] sm:$0xff]
  %v1132 = vld [vmem:[%s13 + $0x10c] sm:$0xff]
  %v1133 = vld [vmem:[%s13 + $0x114] sm:$0xf]
  %v1134 = vld [vmem:[%s13 + $0x118] sm:$0xff]
  %v1135 = vld [vmem:[%s13 + $0x120] sm:$0xff]
  %v1136 = vld [vmem:[%s13 + $0x128] sm:$0xff]
  %v1137 = vld [vmem:[%s13 + $0x130] sm:$0xf]
  %v1138 = vld [vmem:[%s13 + $0x134] sm:$0xff]
  %v1139 = vld [vmem:[%s13 + $0x13c] sm:$0xff]
  %v1140 = vld [vmem:[%s13 + $0x144] sm:$0xff]
  %v1141 = vld [vmem:[%s13 + $0x14c] sm:$0xf]
  %v1142 = vld [vmem:[%s13 + $0x150] sm:$0xff]
  %v1143 = vld [vmem:[%s13 + $0x158] sm:$0xff]
  %v1144 = vld [vmem:[%s13 + $0x160] sm:$0xff]
  %v1145 = vld [vmem:[%s13 + $0x168] sm:$0xf]
  %v1146 = vld [vmem:[%s13 + $0x16c] sm:$0xff]
  %v1147 = vld [vmem:[%s13 + $0x174] sm:$0xff]
  %v1148 = vld [vmem:[%s13 + $0x17c] sm:$0xff]
  %v1149 = vld [vmem:[%s13 + $0x184] sm:$0xf]
  %v1150 = vld [vmem:[%s13 + $0x188] sm:$0xff]
  %v1151 = vld [vmem:[%s13 + $0x190] sm:$0xff]
  %v1152 = vld [vmem:[%s13 + $0x198] sm:$0xff]
  %v1153 = vld [vmem:[%s13 + $0x1a0] sm:$0xf]
  %v1154 = vld [vmem:[%s13 + $0x1a4] sm:$0xff]
  %v1155 = vld [vmem:[%s13 + $0x1ac] sm:$0xff]
  %v1156 = vld [vmem:[%s13 + $0x1b4] sm:$0xff]
  %v1157 = vld [vmem:[%s13 + $0x1bc] sm:$0xf]
  %v1158 = vld [vmem:[%s14] sm:$0x7f]
  %v1160 = vlaneseq
  %v1161 = vshrl.u32 %v1160, 7
  %v1162 = vsub.s32 0, %v1161
  %v1163 = vrot.slane %v1158, %v1162
  %v1164 = vlaneseq
  %v1165 = vshrl.u32 %v1164, 7
  %v1166 = vsub.s32 1, %v1165
  %v1167 = vrot.slane %v1158, %v1166
  %v1168 = vlaneseq
  %v1169 = vshrl.u32 %v1168, 7
  %v1170 = vsub.s32 2, %v1169
  %v1171 = vrot.slane %v1158, %v1170
  %v1172 = vlaneseq
  %v1173 = vshrl.u32 %v1172, 7
  %v1174 = vsub.s32 3, %v1173
  %v1175 = vrot.slane %v1158, %v1174
  %v1176 = vlaneseq
  %v1177 = vshrl.u32 %v1176, 7
  %v1178 = vsub.s32 4, %v1177
  %v1179 = vrot.slane %v1158, %v1178
  %v1180 = vlaneseq
  %v1181 = vshrl.u32 %v1180, 7
  %v1182 = vsub.s32 5, %v1181
  %v1183 = vrot.slane %v1158, %v1182
  %v1184 = vlaneseq
  %v1185 = vshrl.u32 %v1184, 7
  %v1186 = vsub.s32 6, %v1185
  %v1187 = vrot.slane %v1158, %v1186
  %v1259 = vunpack.c.l.b16 %v1094
  %v1260 = vunpack.c.h.b16 %v1094
  %v1261 = vunpack.c.l.b16 %v1095
  %v1262 = vunpack.c.h.b16 %v1095
  %v1263 = vunpack.c.l.b16 %v1096
  %v1264 = vunpack.c.h.b16 %v1096
  %v1265 = vunpack.c.l.b16 %v1097
  %v1266 = vunpack.c.l.b16 %v1098
  %v1267 = vunpack.c.h.b16 %v1098
  %v1268 = vunpack.c.l.b16 %v1099
  %v1269 = vunpack.c.h.b16 %v1099
  %v1270 = vunpack.c.l.b16 %v1100
  %v1271 = vunpack.c.h.b16 %v1100
  %v1272 = vunpack.c.l.b16 %v1101
  %v1273 = vunpack.c.l.b16 %v1102
  %v1274 = vunpack.c.h.b16 %v1102
  %v1275 = vunpack.c.l.b16 %v1103
  %v1276 = vunpack.c.h.b16 %v1103
  %v1277 = vunpack.c.l.b16 %v1104
  %v1278 = vunpack.c.h.b16 %v1104
  %v1279 = vunpack.c.l.b16 %v1105
  %v1280 = vunpack.c.l.b16 %v1106
  %v1281 = vunpack.c.h.b16 %v1106
  %v1282 = vunpack.c.l.b16 %v1107
  %v1283 = vunpack.c.h.b16 %v1107
  %v1284 = vunpack.c.l.b16 %v1108
  %v1285 = vunpack.c.h.b16 %v1108
  %v1286 = vunpack.c.l.b16 %v1109
  %v1287 = vunpack.c.l.b16 %v1110
  %v1288 = vunpack.c.h.b16 %v1110
  %v1289 = vunpack.c.l.b16 %v1111
  %v1290 = vunpack.c.h.b16 %v1111
  %v1291 = vunpack.c.l.b16 %v1112
  %v1292 = vunpack.c.h.b16 %v1112
  %v1293 = vunpack.c.l.b16 %v1113
  %v1294 = vunpack.c.l.b16 %v1114
  %v1295 = vunpack.c.h.b16 %v1114
  %v1296 = vunpack.c.l.b16 %v1115
  %v1297 = vunpack.c.h.b16 %v1115
  %v1298 = vunpack.c.l.b16 %v1116
  %v1299 = vunpack.c.h.b16 %v1116
  %v1300 = vunpack.c.l.b16 %v1117
  %v1301 = vunpack.c.l.b16 %v1118
  %v1302 = vunpack.c.h.b16 %v1118
  %v1303 = vunpack.c.l.b16 %v1119
  %v1304 = vunpack.c.h.b16 %v1119
  %v1305 = vunpack.c.l.b16 %v1120
  %v1306 = vunpack.c.h.b16 %v1120
  %v1307 = vunpack.c.l.b16 %v1121
  %v1308 = vunpack.c.l.b16 %v1122
  %v1309 = vunpack.c.h.b16 %v1122
  %v1310 = vunpack.c.l.b16 %v1123
  %v1311 = vunpack.c.h.b16 %v1123
  %v1312 = vunpack.c.l.b16 %v1124
  %v1313 = vunpack.c.h.b16 %v1124
  %v1314 = vunpack.c.l.b16 %v1125
  %v1315 = vunpack.c.l.b16 %v1126
  %v1316 = vunpack.c.h.b16 %v1126
  %v1317 = vunpack.c.l.b16 %v1127
  %v1318 = vunpack.c.h.b16 %v1127
  %v1319 = vunpack.c.l.b16 %v1128
  %v1320 = vunpack.c.h.b16 %v1128
  %v1321 = vunpack.c.l.b16 %v1129
  %v1322 = vunpack.c.l.b16 %v1130
  %v1323 = vunpack.c.h.b16 %v1130
  %v1324 = vunpack.c.l.b16 %v1131
  %v1325 = vunpack.c.h.b16 %v1131
  %v1326 = vunpack.c.l.b16 %v1132
  %v1327 = vunpack.c.h.b16 %v1132
  %v1328 = vunpack.c.l.b16 %v1133
  %v1329 = vunpack.c.l.b16 %v1134
  %v1330 = vunpack.c.h.b16 %v1134
  %v1331 = vunpack.c.l.b16 %v1135
  %v1332 = vunpack.c.h.b16 %v1135
  %v1333 = vunpack.c.l.b16 %v1136
  %v1334 = vunpack.c.h.b16 %v1136
  %v1335 = vunpack.c.l.b16 %v1137
  %v1336 = vunpack.c.l.b16 %v1138
  %v1337 = vunpack.c.h.b16 %v1138
  %v1338 = vunpack.c.l.b16 %v1139
  %v1339 = vunpack.c.h.b16 %v1139
  %v1340 = vunpack.c.l.b16 %v1140
  %v1341 = vunpack.c.h.b16 %v1140
  %v1342 = vunpack.c.l.b16 %v1141
  %v1343 = vunpack.c.l.b16 %v1142
  %v1344 = vunpack.c.h.b16 %v1142
  %v1345 = vunpack.c.l.b16 %v1143
  %v1346 = vunpack.c.h.b16 %v1143
  %v1347 = vunpack.c.l.b16 %v1144
  %v1348 = vunpack.c.h.b16 %v1144
  %v1349 = vunpack.c.l.b16 %v1145
  %v1350 = vunpack.c.l.b16 %v1146
  %v1351 = vunpack.c.h.b16 %v1146
  %v1352 = vunpack.c.l.b16 %v1147
  %v1353 = vunpack.c.h.b16 %v1147
  %v1354 = vunpack.c.l.b16 %v1148
  %v1355 = vunpack.c.h.b16 %v1148
  %v1356 = vunpack.c.l.b16 %v1149
  %v1357 = vunpack.c.l.b16 %v1150
  %v1358 = vunpack.c.h.b16 %v1150
  %v1359 = vunpack.c.l.b16 %v1151
  %v1360 = vunpack.c.h.b16 %v1151
  %v1361 = vunpack.c.l.b16 %v1152
  %v1362 = vunpack.c.h.b16 %v1152
  %v1363 = vunpack.c.l.b16 %v1153
  %v1364 = vunpack.c.l.b16 %v1154
  %v1365 = vunpack.c.h.b16 %v1154
  %v1366 = vunpack.c.l.b16 %v1155
  %v1367 = vunpack.c.h.b16 %v1155
  %v1368 = vunpack.c.l.b16 %v1156
  %v1369 = vunpack.c.h.b16 %v1156
  %v1370 = vunpack.c.l.b16 %v1157
  %v1371 = vpack.c.b16 %v1266, %v1259
  %v1372 = vpack.c.b16 %v1267, %v1260
  %v1373 = vpack.c.b16 %v1268, %v1261
  %v1374 = vpack.c.b16 %v1269, %v1262
  %v1375 = vpack.c.b16 %v1270, %v1263
  %v1376 = vpack.c.b16 %v1271, %v1264
  %v1377 = vpack.c.b16 %v1272, %v1265
  %v1378 = vpack.c.b16 %v1280, %v1273
  %v1379 = vpack.c.b16 %v1281, %v1274
  %v1380 = vpack.c.b16 %v1282, %v1275
  %v1381 = vpack.c.b16 %v1283, %v1276
  %v1382 = vpack.c.b16 %v1284, %v1277
  %v1383 = vpack.c.b16 %v1285, %v1278
  %v1384 = vpack.c.b16 %v1286, %v1279
  %v1385 = vpack.c.b16 %v1294, %v1287
  %v1386 = vpack.c.b16 %v1295, %v1288
  %v1387 = vpack.c.b16 %v1296, %v1289
  %v1388 = vpack.c.b16 %v1297, %v1290
  %v1389 = vpack.c.b16 %v1298, %v1291
  %v1390 = vpack.c.b16 %v1299, %v1292
  %v1391 = vpack.c.b16 %v1300, %v1293
  %v1392 = vpack.c.b16 %v1308, %v1301
  %v1393 = vpack.c.b16 %v1309, %v1302
  %v1394 = vpack.c.b16 %v1310, %v1303
  %v1395 = vpack.c.b16 %v1311, %v1304
  %v1396 = vpack.c.b16 %v1312, %v1305
  %v1397 = vpack.c.b16 %v1313, %v1306
  %v1398 = vpack.c.b16 %v1314, %v1307
  %v1399 = vpack.c.b16 %v1322, %v1315
  %v1400 = vpack.c.b16 %v1323, %v1316
  %v1401 = vpack.c.b16 %v1324, %v1317
  %v1402 = vpack.c.b16 %v1325, %v1318
  %v1403 = vpack.c.b16 %v1326, %v1319
  %v1404 = vpack.c.b16 %v1327, %v1320
  %v1405 = vpack.c.b16 %v1328, %v1321
  %v1406 = vpack.c.b16 %v1336, %v1329
  %v1407 = vpack.c.b16 %v1337, %v1330
  %v1408 = vpack.c.b16 %v1338, %v1331
  %v1409 = vpack.c.b16 %v1339, %v1332
  %v1410 = vpack.c.b16 %v1340, %v1333
  %v1411 = vpack.c.b16 %v1341, %v1334
  %v1412 = vpack.c.b16 %v1342, %v1335
  %v1413 = vpack.c.b16 %v1350, %v1343
  %v1414 = vpack.c.b16 %v1351, %v1344
  %v1415 = vpack.c.b16 %v1352, %v1345
  %v1416 = vpack.c.b16 %v1353, %v1346
  %v1417 = vpack.c.b16 %v1354, %v1347
  %v1418 = vpack.c.b16 %v1355, %v1348
  %v1419 = vpack.c.b16 %v1356, %v1349
  %v1420 = vpack.c.b16 %v1364, %v1357
  %v1421 = vpack.c.b16 %v1365, %v1358
  %v1422 = vpack.c.b16 %v1366, %v1359
  %v1423 = vpack.c.b16 %v1367, %v1360
  %v1424 = vpack.c.b16 %v1368, %v1361
  %v1425 = vpack.c.b16 %v1369, %v1362
  %v1426 = vpack.c.b16 %v1370, %v1363
  %1483 = vmatprep.subr.bf16.mxu0 %v1421
  %1484 = vmatpush1.bf16.msra.mxu0 %v1420
  %1485 = vmatprep.subr.bf16.mxu0 %v1414
  %1486 = vmatpush1.bf16.msra.mxu0 %v1413
  %1487 = vmatprep.subr.bf16.mxu0 %v1407
  %1488 = vmatpush1.bf16.msra.mxu0 %v1406
  %1489 = vmatprep.subr.bf16.mxu0 %v1400
  %1490 = vmatpush1.bf16.msra.mxu0 %v1399
  %1491 = vmatprep.subr.bf16.mxu0 %v1393
  %1492 = vmatpush1.bf16.msra.mxu0 %v1392
  %1493 = vmatprep.subr.bf16.mxu0 %v1386
  %1494 = vmatpush1.bf16.msra.mxu0 %v1385
  %1495 = vmatprep.subr.bf16.mxu0 %v1379
  %1496 = vmatpush1.bf16.msra.mxu0 %v1378
  %1497 = vmatprep.subr.bf16.mxu0 %v1372
  %1498 = vmatpush1.bf16.msra.mxu0 %v1371
  %1499 = vmatprep.subr.bf16.mxu0 0
  %1500 = vmatpush2.bf16.msra.mxu0 0
  %1501 = vmatprep.subr.bf16.mxu0 0
  %1502 = vmatpush2.bf16.msra.mxu0 0
  %1503 = vmatprep.subr.bf16.mxu0 0
  %1504 = vmatpush2.bf16.msra.mxu0 0
  %1505 = vmatprep.subr.bf16.mxu0 0
  %1506 = vmatpush2.bf16.msra.mxu0 0
  %1507 = vmatprep.subr.bf16.mxu0 0
  %1508 = vmatpush2.bf16.msra.mxu0 0
  %1509 = vmatprep.subr.bf16.mxu0 0
  %1510 = vmatpush2.bf16.msra.mxu0 0
  %1511 = vmatprep.subr.bf16.mxu0 0
  %1512 = vmatpush2.bf16.msra.mxu0 0
  %1513 = vmatprep.subr.bf16.mxu0 0
  %1514 = vmatpush2.bf16.msra.mxu0 0
  %1515 = vmatprep.mubr.bf16.mxu0 0
  %1516 = vmatmul.mubr.bf16.gmra.mxu0 %v1093
  %v1517 = vpop.f32.mrf.mxu0
  %v1518 = vadd.f32 %v1163, %v1517
  %v1519 = vpop.f32.mrf.mxu0
  %v1520 = vadd.f32 %v1167, %v1519
  %v1521 = vpop.f32.mrf.mxu0
  %v1522 = vadd.f32 %v1163, %v1521
  %v1523 = vpop.f32.mrf.mxu0
  %v1524 = vadd.f32 %v1167, %v1523
  %1525 = vdwg.mxu0
  %1526 = vmatprep.subr.bf16.mxu0 %v1423
  %1527 = vmatpush1.bf16.msra.mxu0 %v1422
  %1528 = vmatprep.subr.bf16.mxu0 %v1416
  %1529 = vmatpush1.bf16.msra.mxu0 %v1415
  %1530 = vmatprep.subr.bf16.mxu0 %v1409
  %1531 = vmatpush1.bf16.msra.mxu0 %v1408
  %1532 = vmatprep.subr.bf16.mxu0 %v1402
  %1533 = vmatpush1.bf16.msra.mxu0 %v1401
  %1534 = vmatprep.subr.bf16.mxu0 %v1395
  %1535 = vmatpush1.bf16.msra.mxu0 %v1394
  %1536 = vmatprep.subr.bf16.mxu0 %v1388
  %1537 = vmatpush1.bf16.msra.mxu0 %v1387
  %1538 = vmatprep.subr.bf16.mxu0 %v1381
  %1539 = vmatpush1.bf16.msra.mxu0 %v1380
  %1540 = vmatprep.subr.bf16.mxu0 %v1374
  %1541 = vmatpush1.bf16.msra.mxu0 %v1373
  %1542 = vmatprep.subr.bf16.mxu0 0
  %1543 = vmatpush2.bf16.msra.mxu0 0
  %1544 = vmatprep.subr.bf16.mxu0 0
  %1545 = vmatpush2.bf16.msra.mxu0 0
  %1546 = vmatprep.subr.bf16.mxu0 0
  %1547 = vmatpush2.bf16.msra.mxu0 0
  %1548 = vmatprep.subr.bf16.mxu0 0
  %1549 = vmatpush2.bf16.msra.mxu0 0
  %1550 = vmatprep.subr.bf16.mxu0 0
  %1551 = vmatpush2.bf16.msra.mxu0 0
  %1552 = vmatprep.subr.bf16.mxu0 0
  %1553 = vmatpush2.bf16.msra.mxu0 0
  %1554 = vmatprep.subr.bf16.mxu0 0
  %1555 = vmatpush2.bf16.msra.mxu0 0
  %1556 = vmatprep.subr.bf16.mxu0 0
  %1557 = vmatpush2.bf16.msra.mxu0 0
  %1558 = vmatprep.mubr.bf16.mxu0 0
  %1559 = vmatmul.mubr.bf16.gmra.mxu0 %v1093
  %v1560 = vpop.f32.mrf.mxu0
  %v1561 = vadd.f32 %v1171, %v1560
  %v1562 = vpop.f32.mrf.mxu0
  %v1563 = vadd.f32 %v1175, %v1562
  %v1564 = vpop.f32.mrf.mxu0
  %v1565 = vadd.f32 %v1171, %v1564
  %v1566 = vpop.f32.mrf.mxu0
  %v1567 = vadd.f32 %v1175, %v1566
  %1568 = vdwg.mxu0
  %1569 = vmatprep.subr.bf16.mxu0 %v1425
  %1570 = vmatpush1.bf16.msra.mxu0 %v1424
  %1571 = vmatprep.subr.bf16.mxu0 %v1418
  %1572 = vmatpush1.bf16.msra.mxu0 %v1417
  %1573 = vmatprep.subr.bf16.mxu0 %v1411
  %1574 = vmatpush1.bf16.msra.mxu0 %v1410
  %1575 = vmatprep.subr.bf16.mxu0 %v1404
  %1576 = vmatpush1.bf16.msra.mxu0 %v1403
  %1577 = vmatprep.subr.bf16.mxu0 %v1397
  %1578 = vmatpush1.bf16.msra.mxu0 %v1396
  %1579 = vmatprep.subr.bf16.mxu0 %v1390
  %1580 = vmatpush1.bf16.msra.mxu0 %v1389
  %1581 = vmatprep.subr.bf16.mxu0 %v1383
  %1582 = vmatpush1.bf16.msra.mxu0 %v1382
  %1583 = vmatprep.subr.bf16.mxu0 %v1376
  %1584 = vmatpush1.bf16.msra.mxu0 %v1375
  %1585 = vmatprep.subr.bf16.mxu0 0
  %1586 = vmatpush2.bf16.msra.mxu0 0
  %1587 = vmatprep.subr.bf16.mxu0 0
  %1588 = vmatpush2.bf16.msra.mxu0 0
  %1589 = vmatprep.subr.bf16.mxu0 0
  %1590 = vmatpush2.bf16.msra.mxu0 0
  %1591 = vmatprep.subr.bf16.mxu0 0
  %1592 = vmatpush2.bf16.msra.mxu0 0
  %1593 = vmatprep.subr.bf16.mxu0 0
  %1594 = vmatpush2.bf16.msra.mxu0 0
  %1595 = vmatprep.subr.bf16.mxu0 0
  %1596 = vmatpush2.bf16.msra.mxu0 0
  %1597 = vmatprep.subr.bf16.mxu0 0
  %1598 = vmatpush2.bf16.msra.mxu0 0
  %1599 = vmatprep.subr.bf16.mxu0 0
  %1600 = vmatpush2.bf16.msra.mxu0 0
  %1601 = vmatprep.mubr.bf16.mxu0 0
  %1602 = vmatmul.mubr.bf16.gmra.mxu0 %v1093
  %v1603 = vpop.f32.mrf.mxu0
  %v1604 = vadd.f32 %v1179, %v1603
  %v1605 = vpop.f32.mrf.mxu0
  %v1606 = vadd.f32 %v1183, %v1605
  %v1607 = vpop.f32.mrf.mxu0
  %v1608 = vadd.f32 %v1179, %v1607
  %v1609 = vpop.f32.mrf.mxu0
  %v1610 = vadd.f32 %v1183, %v1609
  %1611 = vdwg.mxu0
  %1612 = vmatprep.subr.bf16.mxu0 0
  %1613 = vmatpush1.bf16.msra.mxu0 %v1426
  %1614 = vmatprep.subr.bf16.mxu0 0
  %1615 = vmatpush1.bf16.msra.mxu0 %v1419
  %1616 = vmatprep.subr.bf16.mxu0 0
  %1617 = vmatpush1.bf16.msra.mxu0 %v1412
  %1618 = vmatprep.subr.bf16.mxu0 0
  %1619 = vmatpush1.bf16.msra.mxu0 %v1405
  %1620 = vmatprep.subr.bf16.mxu0 0
  %1621 = vmatpush1.bf16.msra.mxu0 %v1398
  %1622 = vmatprep.subr.bf16.mxu0 0
  %1623 = vmatpush1.bf16.msra.mxu0 %v1391
  %1624 = vmatprep.subr.bf16.mxu0 0
  %1625 = vmatpush1.bf16.msra.mxu0 %v1384
  %1626 = vmatprep.subr.bf16.mxu0 0
  %1627 = vmatpush1.bf16.msra.mxu0 %v1377
  %1628 = vmatprep.subr.bf16.mxu0 0
  %1629 = vmatpush2.bf16.msra.mxu0 0
  %1630 = vmatprep.subr.bf16.mxu0 0
  %1631 = vmatpush2.bf16.msra.mxu0 0
  %1632 = vmatprep.subr.bf16.mxu0 0
  %1633 = vmatpush2.bf16.msra.mxu0 0
  %1634 = vmatprep.subr.bf16.mxu0 0
  %1635 = vmatpush2.bf16.msra.mxu0 0
  %1636 = vmatprep.subr.bf16.mxu0 0
  %1637 = vmatpush2.bf16.msra.mxu0 0
  %1638 = vmatprep.subr.bf16.mxu0 0
  %1639 = vmatpush2.bf16.msra.mxu0 0
  %1640 = vmatprep.subr.bf16.mxu0 0
  %1641 = vmatpush2.bf16.msra.mxu0 0
  %1642 = vmatprep.subr.bf16.mxu0 0
  %1643 = vmatpush2.bf16.msra.mxu0 0
  %1644 = vmatprep.mubr.bf16.mxu0 0
  %1645 = vmatmul.mubr.bf16.gmra.mxu0 %v1093
  %v1646 = vpop.f32.mrf.mxu0
  %v1647 = vadd.f32 %v1187, %v1646
  %v1648 = vpop.f32.mrf.mxu0
  %v1649 = vpop.f32.mrf.mxu0
  %v1650 = vadd.f32 %v1187, %v1649
  %v1651 = vpop.f32.mrf.mxu0
  %1652 = vdwg.mxu0
  %v1653 = vmul.f32 %v1518, 0.5
  %v1654 = vmul.f32 %v1520, 0.5
  %v1655 = vmul.f32 %v1561, 0.5
  %v1656 = vmul.f32 %v1563, 0.5
  %v1657 = vmul.f32 %v1604, 0.5
  %v1658 = vmul.f32 %v1606, 0.5
  %v1659 = vmul.f32 %v1647, 0.5
  %v1660 = vmul.f32 %v1522, 0.5
  %v1661 = vmul.f32 %v1524, 0.5
  %v1662 = vmul.f32 %v1565, 0.5
  %v1663 = vmul.f32 %v1567, 0.5
  %v1664 = vmul.f32 %v1608, 0.5
  %v1665 = vmul.f32 %v1610, 0.5
  %v1666 = vmul.f32 %v1650, 0.5
  %v1667 = vtanh.pop %v1653
  %v1668 = vtanh.pop %v1654
  %v1669 = vtanh.pop %v1655
  %v1670 = vtanh.pop %v1656
  %v1671 = vtanh.pop %v1657
  %v1672 = vtanh.pop %v1658
  %v1673 = vtanh.pop %v1659
  %v1674 = vtanh.pop %v1660
  %v1675 = vtanh.pop %v1661
  %v1676 = vtanh.pop %v1662
  %v1677 = vtanh.pop %v1663
  %v1678 = vtanh.pop %v1664
  %v1679 = vtanh.pop %v1665
  %v1680 = vtanh.pop %v1666
  %v1681 = vmul.f32 %v1667, 0.5
  %v1682 = vmul.f32 %v1668, 0.5
  %v1683 = vmul.f32 %v1669, 0.5
  %v1684 = vmul.f32 %v1670, 0.5
  %v1685 = vmul.f32 %v1671, 0.5
  %v1686 = vmul.f32 %v1672, 0.5
  %v1687 = vmul.f32 %v1673, 0.5
  %v1688 = vmul.f32 %v1674, 0.5
  %v1689 = vmul.f32 %v1675, 0.5
  %v1690 = vmul.f32 %v1676, 0.5
  %v1691 = vmul.f32 %v1677, 0.5
  %v1692 = vmul.f32 %v1678, 0.5
  %v1693 = vmul.f32 %v1679, 0.5
  %v1694 = vmul.f32 %v1680, 0.5
  %v1695 = vadd.f32 %v1681, 0.5
  %v1696 = vadd.f32 %v1682, 0.5
  %v1697 = vadd.f32 %v1683, 0.5
  %v1698 = vadd.f32 %v1684, 0.5
  %v1699 = vadd.f32 %v1685, 0.5
  %v1700 = vadd.f32 %v1686, 0.5
  %v1701 = vadd.f32 %v1687, 0.5
  %v1702 = vadd.f32 %v1688, 0.5
  %v1703 = vadd.f32 %v1689, 0.5
  %v1704 = vadd.f32 %v1690, 0.5
  %v1705 = vadd.f32 %v1691, 0.5
  %v1706 = vadd.f32 %v1692, 0.5
  %v1707 = vadd.f32 %v1693, 0.5
  %v1708 = vadd.f32 %v1694, 0.5
  %v1709 = vpack.c.bf16 %v1702, %v1695
  %v1710 = vpack.c.bf16 %v1703, %v1696
  %v1711 = vpack.c.bf16 %v1704, %v1697
  %v1712 = vpack.c.bf16 %v1705, %v1698
  %v1713 = vpack.c.bf16 %v1706, %v1699
  %v1714 = vpack.c.bf16 %v1707, %v1700
  %v1715 = vpack.c.bf16 %v1708, %v1701
  %v1723 = vunpack.c.l.b16 %v1709
  %v1724 = vunpack.c.l.b16 %v1710
  %v1725 = vunpack.c.l.b16 %v1711
  %v1726 = vunpack.c.l.b16 %v1712
  %v1727 = vunpack.c.l.b16 %v1713
  %v1728 = vunpack.c.l.b16 %v1714
  %v1729 = vunpack.c.l.b16 %v1715
  %v1730 = vunpack.c.h.b16 %v1709
  %v1731 = vunpack.c.h.b16 %v1710
  %v1732 = vunpack.c.h.b16 %v1711
  %v1733 = vunpack.c.h.b16 %v1712
  %v1734 = vunpack.c.h.b16 %v1713
  %v1735 = vunpack.c.h.b16 %v1714
  %v1736 = vunpack.c.h.b16 %v1715
  %v1737 = vpack.c.b16 %v1724, %v1723
  %v1738 = vpack.c.b16 %v1726, %v1725
  %v1739 = vpack.c.b16 %v1728, %v1727
  %v1740 = vpack.c.b16 %v1729, %v1729
  %v1741 = vpack.c.b16 %v1731, %v1730
  %v1742 = vpack.c.b16 %v1733, %v1732
  %v1743 = vpack.c.b16 %v1735, %v1734
  %v1744 = vpack.c.b16 %v1736, %v1736
  %1753 = vst [vmem:[%s16] sm:$0xff] %v1737
  %1754 = vst [vmem:[%s16 + $0x8] sm:$0xff] %v1738
  %1755 = vst [vmem:[%s16 + $0x10] sm:$0xff] %v1739
  %vm1756 = vcmask 125952
  %1757 = vst.msk [vmem:[%s16 + $0x18] sm:$0xf] %vm1756, %v1740
  %1758 = vst [vmem:[%s16 + $0x1c] sm:$0xff] %v1741
  %1759 = vst [vmem:[%s16 + $0x24] sm:$0xff] %v1742
  %1760 = vst [vmem:[%s16 + $0x2c] sm:$0xff] %v1743
  %1761 = vst.msk [vmem:[%s16 + $0x34] sm:$0xf] %vm1756, %v1744
  // Predicated region
  $region62: #{_autoencoder_forward.1} parent=0 // pred_check
    _
  $region63: #{_autoencoder_forward.1} parent=0 // pred_check_branch
    %1763 = sbr.rel (0) target = $region65
  $region64: #{_autoencoder_forward.1} parent=0 // pred_region
    _
  $region65: #{_autoencoder_forward.1} parent=0 // pred_fallthru
    _
  // Predicated region
  $region66: #{_autoencoder_forward.1} parent=0 // pred_check
    _
  $region67: #{_autoencoder_forward.1} parent=0 // pred_check_branch
    %1765 = sbr.rel (0) target = $region69
  $region68: #{_autoencoder_forward.1} parent=0 // pred_region
    _
  $region69: #{_autoencoder_forward.1} parent=0 // pred_fallthru
    _
  // Predicated region
  $region70: #{_autoencoder_forward.1} parent=0 // pred_check
    _
  $region71: #{_autoencoder_forward.1} parent=0 // pred_check_branch
    %1767 = sbr.rel (0) target = $region73
  $region72: #{_autoencoder_forward.1} parent=0 // pred_region
    _
  $region73: #{_autoencoder_forward.1} parent=0 // pred_fallthru
    _
  // Predicated region
  $region74: #{_autoencoder_forward.1} parent=0 // pred_check
    _
  $region75: #{_autoencoder_forward.1} parent=0 // pred_check_branch
    %1769 = sbr.rel (0) target = $region77
  $region76: #{_autoencoder_forward.1} parent=0 // pred_region
    _
  $region77: #{_autoencoder_forward.1} parent=0 // pred_fallthru
    _

</llo_original>
